<compile_context>
chip_gen: v7x
topology: tpu7x:2x2x1
jax: 0.10.0
libtpu: 0.0.40
codegen_flags: <defaults>
</compile_context>

<pallas_src>
import numpy as np
import jax
import jax.numpy as jnp
from jax.experimental import pallas as pl
from jax.experimental.pallas import tpu as pltpu

_WPAD = 16  # window-offset granularity (multiple of the f32 sublane tile of 8)


def _default_block_rows():
    """512 rows/block on v6e/v7x (bandwidth-rich), 256 on v5e and older."""
    try:
        kind = jax.devices()[0].device_kind.lower()
    except Exception:
        return 256
    if ("v6" in kind) or ("v7" in kind) or ("7x" in kind):
        return 512
    return 256


def _split3_bf16(x_f32):
    """Split f32 -> (hi, mid, lo) bf16 pieces with hi+mid+lo == x exactly.

    hi keeps sign/exponent/top-7 mantissa bits, the residuals hold <=16 and
    <=8 significant bits, so every piece converts to bf16 exactly and the f32
    re-sum is exact (finite inputs; -0.0 / denormals excepted).
    """
    mask_hi = jnp.int32(-65536)  # 0xFFFF0000
    bits = pltpu.bitcast(x_f32, jnp.int32)
    hi = pltpu.bitcast(bits & mask_hi, jnp.float32)
    r1 = x_f32 - hi
    bits1 = pltpu.bitcast(r1, jnp.int32)
    mid = pltpu.bitcast(bits1 & mask_hi, jnp.float32)
    lo = r1 - mid
    return (hi.astype(jnp.bfloat16),
            mid.astype(jnp.bfloat16),
            lo.astype(jnp.bfloat16))


def _upsample_block_kernel(wb_ref, off_ref, cnt_ref,              # scalar prefetch (SMEM)
                           old_ref, nlo_ref, nhi_ref,             # (TM,F) inputs
                           mask_ref, rel_ref,                     # (TM,1) metadata
                           out_ref,                               # (TM,F) output
                           win_ref):                              # (2TM,F) VMEM scratch
    del wb_ref  # consumed only by the index_maps
    i = pl.program_id(0)
    tm = old_ref.shape[0]
    wsz = tm + _WPAD

    @pl.when(cnt_ref[i] == 0)
    def _():
        # No masked rows in this block: plain streaming copy, skip the gather.
        out_ref[...] = old_ref[...]

    @pl.when(cnt_ref[i] > 0)
    def _():
        # Stage the two TM-aligned compacted blocks covering this block's
        # source range, then take the 16-aligned (TM+16, F) window actually
        # needed (halves the MXU contraction and the selector width vs 2*TM).
        win_ref[:tm, :] = nlo_ref[...]
        win_ref[tm:, :] = nhi_ref[...]
        s = pl.multiple_of(off_ref[i], _WPAD)
        window = win_ref[pl.ds(s, wsz), :]                        # (TM+16, F) f32

        # One-hot selector: output row r takes window row rel[r] (rel is the
        # prefix-sum source index made window-relative in the wrapper;
        # unmasked rows carry out-of-range / stale values -> all-zero row or a
        # finite value discarded by the jnp.where below).
        rel = rel_ref[...]                                        # (TM, 1) i32
        cols = jax.lax.broadcasted_iota(jnp.int32, (tm, wsz), 1)
        onehot = (cols == rel).astype(jnp.bfloat16)               # (TM, TM+16)

        # Exact gather-by-matmul on the MXU: 3 bf16 pieces summing exactly.
        hi, mid, lo = _split3_bf16(window)
        gathered = (
            jnp.dot(onehot, hi, preferred_element_type=jnp.float32)
            + jnp.dot(onehot, mid, preferred_element_type=jnp.float32)
            + jnp.dot(onehot, lo, preferred_element_type=jnp.float32)
        )                                                         # (TM, F) f32

        keep_new = mask_ref[...] != 0                             # (TM, 1)
        out_ref[...] = jnp.where(keep_new, gathered, old_ref[...])


def masked_row_scatter(old_features, new_features, mask, *, block_rows=None):
    """out = old_features; out[mask] = new_features (rows taken in order)."""
    assert old_features.dtype == jnp.float32, "exact path implemented for float32"
    # TODO(synk): for production F < 128, pack 128//F rows per lane-row (and
    # expand the mask accordingly) to keep stores lane-dense; demo uses F=128.
    e_old, f = old_features.shape
    tm = block_rows if block_rows is not None else _default_block_rows()
    tm = int(min(tm, max(_WPAD, -(-e_old // _WPAD) * _WPAD)))     # multiple of 16
    nblk = pl.cdiv(e_old, tm)
    e_pad = nblk * tm                                             # pads metadata only

    # Cheap per-row / per-block metadata (computed once, tiny arrays).
    mask1d = jnp.pad(mask.astype(jnp.int32), (0, e_pad - e_old))
    incl = jnp.cumsum(mask1d, dtype=jnp.int32)                    # inclusive count
    excl = incl - mask1d                                          # exclusive count
    excl_blk = excl.reshape(nblk, tm)[:, 0]                       # count at block start
    wb = (excl_blk // tm).astype(jnp.int32)                       # TM-aligned lo block
    off = (((excl_blk - wb * tm) // _WPAD) * _WPAD).astype(jnp.int32)  # in-window offset
    cnt = jnp.sum(mask1d.reshape(nblk, tm), axis=1).astype(jnp.int32)  # masked rows/block
    base = jnp.repeat(wb * tm + off, tm)                          # per-row window base
    rel = (incl - 1 - base).astype(jnp.int32).reshape(e_pad, 1)
    mask2d = mask1d.reshape(e_pad, 1)

    # Pad the compacted features with zeros so window blocks wb[i] and wb[i]+1
    # always exist and never expose stale (possibly non-finite) VMEM contents.
    e_new = new_features.shape[0]
    new_rows = (e_new // tm + 2) * tm
    new_p = jnp.pad(new_features, ((0, new_rows - e_new), (0, 0)))

    return pl.pallas_call(
        _upsample_block_kernel,
        out_shape=jax.ShapeDtypeStruct((e_old, f), old_features.dtype),
        grid_spec=pltpu.PrefetchScalarGridSpec(
            num_scalar_prefetch=3,
            grid=(nblk,),
            in_specs=[
                # stashed full-resolution features, one (TM, F) block per step;
                # ragged last block's DMAs are bounded by Pallas (no pre-pad).
                pl.BlockSpec((tm, f), lambda i, w, o, c: (i, 0)),
                # compacted features: two TM-aligned blocks covering the window
                pl.BlockSpec((tm, f), lambda i, w, o, c: (w[i], 0)),
                pl.BlockSpec((tm, f), lambda i, w, o, c: (w[i] + 1, 0)),
                # mask and window-relative source index as vector VMEM blocks
                pl.BlockSpec((tm, 1), lambda i, w, o, c: (i, 0)),
                pl.BlockSpec((tm, 1), lambda i, w, o, c: (i, 0)),
            ],
            out_specs=pl.BlockSpec((tm, f), lambda i, w, o, c: (i, 0)),
            scratch_shapes=[pltpu.VMEM((2 * tm, f), jnp.float32)],
        ),
        compiler_params=pltpu.CompilerParams(
            dimension_semantics=("parallel",)),
    )(wb, off, cnt, old_features, new_p, new_p, mask2d, rel)
    # TODO(synk): low-mask-density v5e variant: alias old_features to the
    # output (input_output_aliases) and grid only over dirty blocks to make
    # HBM traffic density-proportional; not needed for these shapes.


class UpSample:
    """JAX/Pallas port of models/core/postcvpr.py::UpSample (no learnable params)."""

    def __init__(self, edgesets):
        self.edgesets = edgesets

    def restore_edgeset(self, sample, edgeset_dict, stashed_data):
        key = (edgeset_dict['source'], edgeset_dict['edge_key'], edgeset_dict['target'])
        edgeset = sample[key]
        mask = stashed_data['mask']
        restored = {
            # edge_index restore is a pure data swap (no compute)
            'edge_index': stashed_data['old']['edge_index'],
            # hot path: masked row-scatter done in the Pallas kernel
            'features': masked_row_scatter(
                stashed_data['old']['features'], edgeset['features'], mask),
        }
        sample[key] = restored
        return sample

    def forward(self, sample, stashed_data):
        for edge_label, stashed_dict in stashed_data.items():
            edgeset_dict = self.edgesets[edge_label]
            sample = self.restore_edgeset(sample, edgeset_dict, stashed_dict)
        return sample


if __name__ == "__main__":
    key = jax.random.PRNGKey(0)
    k_mask, k_old, k_new = jax.random.split(key, 3)

    E_OLD, F = 1000, 128              # ragged: spans multiple blocks, last one partial
    mask = jax.random.bernoulli(k_mask, 0.5, (E_OLD,))
    # demo only: in a jitted end-to-end pipeline E_new must be static / padded
    e_new = int(mask.sum())

    old_features = jax.random.normal(k_old, (E_OLD, F), dtype=jnp.float32)
    new_features = jax.random.normal(k_new, (e_new, F), dtype=jnp.float32)
    old_edge_index = jnp.stack(
        [jnp.arange(E_OLD), (jnp.arange(E_OLD) + 1) % E_OLD]).astype(jnp.int32)

    # heterograph-style containers, mirroring the PyTorch data layout
    edgesets = {'mesh': {'source': 'node', 'edge_key': 'mesh_edge', 'target': 'node'}}
    sample = {
        ('node', 'mesh_edge', 'node'): {
            'edge_index': old_edge_index[:, np.array(mask)],  # downsampled edges
            'features': new_features,                         # downsampled features
        }
    }
    stashed_data = {
        'mesh': {
            'mask': mask,
            'old': {'edge_index': old_edge_index, 'features': old_features},
        }
    }

    model = UpSample(edgesets)
    out_sample = model.forward(sample, stashed_data)
    out = out_sample[('node', 'mesh_edge', 'node')]['features']
    out = jax.block_until_ready(out)

    # reference: exact PyTorch semantics of features_restored[mask] = new_features
    ref = np.array(old_features)
    ref[np.array(mask)] = np.array(new_features)
    np.testing.assert_allclose(np.array(out), ref, rtol=0, atol=0)

    # edge_index restored to the stashed (full) one
    np.testing.assert_array_equal(
        np.array(out_sample[('node', 'mesh_edge', 'node')]['edge_index']),
        np.array(old_edge_index))

    print("KERNEL_OK")
</pallas_src>

<mosaic_0001>
module attributes {stable_mosaic.version = 11 : i64} {
  func.func @_upsample_block_kernel(%arg0: i32, %arg1: memref<4xi32, #tpu.memory_space<smem>>, %arg2: memref<4xi32, #tpu.memory_space<smem>>, %arg3: memref<4xi32, #tpu.memory_space<smem>>, %arg4: memref<256x128xf32, #tpu.memory_space<vmem>>, %arg5: memref<256x128xf32, #tpu.memory_space<vmem>>, %arg6: memref<256x128xf32, #tpu.memory_space<vmem>>, %arg7: memref<256x1xi32, #tpu.memory_space<vmem>>, %arg8: memref<256x1xi32, #tpu.memory_space<vmem>>, %arg9: memref<256x128xf32, #tpu.memory_space<vmem>>, %arg10: memref<512x128xf32, #tpu.memory_space<vmem>>) attributes {dimension_semantics = [#tpu.dimension_semantics<parallel>], iteration_bounds = array<i64: 4>, scalar_prefetch = 3 : i64, scratch_operands = 1 : i64, tpu.core_type = #tpu.core_type<tc>, window_params = [{transform_indices = @transform_0, window_bounds = array<i64: 256, 128>}, {transform_indices = @transform_1, window_bounds = array<i64: 256, 128>}, {transform_indices = @transform_2, window_bounds = array<i64: 256, 128>}, {transform_indices = @transform_3, window_bounds = array<i64: 256, 1>}, {transform_indices = @transform_4, window_bounds = array<i64: 256, 1>}, {transform_indices = @transform_5, window_bounds = array<i64: 256, 128>}]} {
    %0 = arith.index_cast %arg0 : i32 to index
    %1 = memref.load %arg3[%0] : memref<4xi32, #tpu.memory_space<smem>>
    %c0_i32 = arith.constant 0 : i32
    %2 = arith.cmpi eq, %1, %c0_i32 : i32
    %3 = arith.extui %2 : i1 to i32
    %c0_i32_0 = arith.constant 0 : i32
    %4 = arith.cmpi ne, %3, %c0_i32_0 : i32
    scf.if %4 {
      %c0 = arith.constant 0 : index
      %c0_3 = arith.constant 0 : index
      %10 = vector.load %arg4[%c0, %c0_3] : memref<256x128xf32, #tpu.memory_space<vmem>>, vector<256x128xf32>
      %c0_4 = arith.constant 0 : index
      %c0_5 = arith.constant 0 : index
      %11 = vector.load %arg9[%c0_4, %c0_5] : memref<256x128xf32, #tpu.memory_space<vmem>>, vector<256x128xf32>
      tpu.vector_store %arg9[%c0_4, %c0_5], %10 {strides = array<i32>} : memref<256x128xf32, #tpu.memory_space<vmem>>, vector<256x128xf32>,
    } else {
    }
    %5 = arith.index_cast %arg0 : i32 to index
    %6 = memref.load %arg3[%5] : memref<4xi32, #tpu.memory_space<smem>>
    %c0_i32_1 = arith.constant 0 : i32
    %7 = arith.cmpi sgt, %6, %c0_i32_1 : i32
    %8 = arith.extui %7 : i1 to i32
    %c0_i32_2 = arith.constant 0 : i32
    %9 = arith.cmpi ne, %8, %c0_i32_2 : i32
    scf.if %9 {
      %c0 = arith.constant 0 : index
      %c0_3 = arith.constant 0 : index
      %10 = vector.load %arg5[%c0, %c0_3] : memref<256x128xf32, #tpu.memory_space<vmem>>, vector<256x128xf32>
      %c0_4 = arith.constant 0 : index
      %c0_5 = arith.constant 0 : index
      %11 = vector.load %arg10[%c0_4, %c0_5] : memref<512x128xf32, #tpu.memory_space<vmem>>, vector<256x128xf32>
      tpu.vector_store %arg10[%c0_4, %c0_5], %10 {strides = array<i32>} : memref<512x128xf32, #tpu.memory_space<vmem>>, vector<256x128xf32>,
      %c0_6 = arith.constant 0 : index
      %c0_7 = arith.constant 0 : index
      %12 = vector.load %arg6[%c0_6, %c0_7] : memref<256x128xf32, #tpu.memory_space<vmem>>, vector<256x128xf32>
      %c256 = arith.constant 256 : index
      %c0_8 = arith.constant 0 : index
      %13 = vector.load %arg10[%c256, %c0_8] : memref<512x128xf32, #tpu.memory_space<vmem>>, vector<256x128xf32>
      tpu.vector_store %arg10[%c256, %c0_8], %12 {strides = array<i32>} : memref<512x128xf32, #tpu.memory_space<vmem>>, vector<256x128xf32>,
      %14 = arith.index_cast %arg0 : i32 to index
      %15 = memref.load %arg2[%14] : memref<4xi32, #tpu.memory_space<smem>>
      %16 = tpu.assume_multiple %15, 16 : i32
      %17 = arith.index_cast %16 : i32 to index
      %c0_9 = arith.constant 0 : index
      %18 = vector.load %arg10[%17, %c0_9] : memref<512x128xf32, #tpu.memory_space<vmem>>, vector<272x128xf32>
      %c0_10 = arith.constant 0 : index
      %c0_11 = arith.constant 0 : index
      %19 = vector.load %arg8[%c0_10, %c0_11] : memref<256x1xi32, #tpu.memory_space<vmem>>, vector<256x1xi32>
      %20 = tpu.iota {dimensions = array<i32: 1>} : vector<256x272xi32>
      %21 = vector.broadcast %19 : vector<256x1xi32> to vector<256x272xi32>
      %22 = arith.cmpi eq, %20, %21 : vector<256x272xi32>
      %23 = arith.extui %22 : vector<256x272xi1> to vector<256x272xi32>
      %24 = arith.sitofp %23 : vector<256x272xi32> to vector<256x272xf32>
      %25 = arith.truncf %24 : vector<256x272xf32> to vector<256x272xbf16>
      %26 = tpu.bitcast %18 : vector<272x128xf32> -> vector<272x128xi32>
      %c-65536_i32 = arith.constant -65536 : i32
      %27 = vector.broadcast %c-65536_i32 : i32 to vector<272x128xi32>
      %28 = arith.andi %26, %27 : vector<272x128xi32>
      %29 = tpu.bitcast %28 : vector<272x128xi32> -> vector<272x128xf32>
      %30 = arith.subf %18, %29 : vector<272x128xf32>
      %31 = tpu.bitcast %30 : vector<272x128xf32> -> vector<272x128xi32>
      %c-65536_i32_12 = arith.constant -65536 : i32
      %32 = vector.broadcast %c-65536_i32_12 : i32 to vector<272x128xi32>
      %33 = arith.andi %31, %32 : vector<272x128xi32>
      %34 = tpu.bitcast %33 : vector<272x128xi32> -> vector<272x128xf32>
      %35 = arith.subf %30, %34 : vector<272x128xf32>
      %36 = arith.truncf %29 : vector<272x128xf32> to vector<272x128xbf16>
      %37 = arith.truncf %34 : vector<272x128xf32> to vector<272x128xbf16>
      %38 = arith.truncf %35 : vector<272x128xf32> to vector<272x128xbf16>
      %cst = arith.constant dense<0.000000e+00> : vector<256x128xf32>
      %39 = tpu.matmul %25, %36, %cst {dimension_numbers = #tpu.dot_dimension_numbers<[1], [0], [0], [1], [0, 0, 1, 1], [], []>} : vector<256x272xbf16>, vector<272x128xbf16>, vector<256x128xf32> -> vector<256x128xf32>
      %cst_13 = arith.constant dense<0.000000e+00> : vector<256x128xf32>
      %40 = tpu.matmul %25, %37, %cst_13 {dimension_numbers = #tpu.dot_dimension_numbers<[1], [0], [0], [1], [0, 0, 1, 1], [], []>} : vector<256x272xbf16>, vector<272x128xbf16>, vector<256x128xf32> -> vector<256x128xf32>
      %41 = arith.addf %39, %40 : vector<256x128xf32>
      %cst_14 = arith.constant dense<0.000000e+00> : vector<256x128xf32>
      %42 = tpu.matmul %25, %38, %cst_14 {dimension_numbers = #tpu.dot_dimension_numbers<[1], [0], [0], [1], [0, 0, 1, 1], [], []>} : vector<256x272xbf16>, vector<272x128xbf16>, vector<256x128xf32> -> vector<256x128xf32>
      %43 = arith.addf %41, %42 : vector<256x128xf32>
      %c0_15 = arith.constant 0 : index
      %c0_16 = arith.constant 0 : index
      %44 = vector.load %arg7[%c0_15, %c0_16] : memref<256x1xi32, #tpu.memory_space<vmem>>, vector<256x1xi32>
      %c0_i32_17 = arith.constant 0 : i32
      %45 = vector.broadcast %c0_i32_17 : i32 to vector<256x1xi32>
      %46 = arith.cmpi ne, %44, %45 : vector<256x1xi32>
      %c0_18 = arith.constant 0 : index
      %c0_19 = arith.constant 0 : index
      %47 = vector.load %arg4[%c0_18, %c0_19] : memref<256x128xf32, #tpu.memory_space<vmem>>, vector<256x128xf32>
      %48 = vector.shape_cast %46 : vector<256x1xi1> to vector<256x1xi1>
      %49 = vector.broadcast %48 : vector<256x1xi1> to vector<256x128xi1>
      %50 = arith.select %49, %43, %47 : vector<256x128xi1>, vector<256x128xf32>
      %c0_20 = arith.constant 0 : index
      %c0_21 = arith.constant 0 : index
      %51 = vector.load %arg9[%c0_20, %c0_21] : memref<256x128xf32, #tpu.memory_space<vmem>>, vector<256x128xf32>
      tpu.vector_store %arg9[%c0_20, %c0_21], %50 {strides = array<i32>} : memref<256x128xf32, #tpu.memory_space<vmem>>, vector<256x128xf32>,
    } else {
    }
    return
  }
  func.func @transform_0(%arg0: i32, %arg1: memref<4xi32, #tpu.memory_space<smem>>, %arg2: memref<4xi32, #tpu.memory_space<smem>>, %arg3: memref<4xi32, #tpu.memory_space<smem>>) -> (i32, i32) {
    %c0_i32 = arith.constant 0 : i32
    %c0_i32_0 = arith.constant 0 : i32
    return %arg0, %c0_i32 : i32, i32
  }
  func.func @transform_1(%arg0: i32, %arg1: memref<4xi32, #tpu.memory_space<smem>>, %arg2: memref<4xi32, #tpu.memory_space<smem>>, %arg3: memref<4xi32, #tpu.memory_space<smem>>) -> (i32, i32) {
    %0 = arith.index_cast %arg0 : i32 to index
    %1 = memref.load %arg1[%0] : memref<4xi32, #tpu.memory_space<smem>>
    %c0_i32 = arith.constant 0 : i32
    %c0_i32_0 = arith.constant 0 : i32
    return %1, %c0_i32 : i32, i32
  }
  func.func @transform_2(%arg0: i32, %arg1: memref<4xi32, #tpu.memory_space<smem>>, %arg2: memref<4xi32, #tpu.memory_space<smem>>, %arg3: memref<4xi32, #tpu.memory_space<smem>>) -> (i32, i32) {
    %0 = arith.index_cast %arg0 : i32 to index
    %1 = memref.load %arg1[%0] : memref<4xi32, #tpu.memory_space<smem>>
    %c1_i32 = arith.constant 1 : i32
    %2 = arith.addi %1, %c1_i32 : i32
    %c0_i32 = arith.constant 0 : i32
    %c0_i32_0 = arith.constant 0 : i32
    return %2, %c0_i32 : i32, i32
  }
  func.func @transform_3(%arg0: i32, %arg1: memref<4xi32, #tpu.memory_space<smem>>, %arg2: memref<4xi32, #tpu.memory_space<smem>>, %arg3: memref<4xi32, #tpu.memory_space<smem>>) -> (i32, i32) {
    %c0_i32 = arith.constant 0 : i32
    %c0_i32_0 = arith.constant 0 : i32
    return %arg0, %c0_i32 : i32, i32
  }
  func.func @transform_4(%arg0: i32, %arg1: memref<4xi32, #tpu.memory_space<smem>>, %arg2: memref<4xi32, #tpu.memory_space<smem>>, %arg3: memref<4xi32, #tpu.memory_space<smem>>) -> (i32, i32) {
    %c0_i32 = arith.constant 0 : i32
    %c0_i32_0 = arith.constant 0 : i32
    return %arg0, %c0_i32 : i32, i32
  }
  func.func @transform_5(%arg0: i32, %arg1: memref<4xi32, #tpu.memory_space<smem>>, %arg2: memref<4xi32, #tpu.memory_space<smem>>, %arg3: memref<4xi32, #tpu.memory_space<smem>>) -> (i32, i32) {
    %c0_i32 = arith.constant 0 : i32
    %c0_i32_0 = arith.constant 0 : i32
    return %arg0, %c0_i32 : i32, i32
  }
}

</mosaic_0001>

<llo_original>
// kernel: tpu_custom_call.1
$region0: #{tpu_custom_call.1}
  #allocation0 [shape = 'u32[]', space=smem, size = 0x4, offset = 0x4, fixed_abs, tag = 'smem constant byte address 0x4 - core index']
  #allocation1 [shape = 'u32[144,128]{1,0:T(1,128)}', space=vmem, size = 0x12000, scoped, tag = 'internal scratch']
  #allocation2 [shape = 'f32[512,128]{1,0:T(8,128)}', space=vmem, size = 0x40000, scoped, tag = 'scratch operand']
  #allocation3 [shape = 's32[1]{0}', space=sflag, size = 0x4, scoped, tag = 'scoped memory for tpu_custom_call.1']
  #allocation4 [shape = 'u8[512]{0}', space=smem, size = 0x200, scoped, tag = 'prefetched SMEM operand 0']
  #allocation5 [shape = 'u8[512]{0}', space=smem, size = 0x200, scoped, tag = 'prefetched SMEM operand 1']
  #allocation6 [shape = 'u8[512]{0}', space=smem, size = 0x200, scoped, tag = 'prefetched SMEM operand 2']
  %s0 = inlined_call_operand.vmem [shape: s32[4], index: 0, kind: input, shape index: {}]
  %s1 = inlined_call_operand.vmem [shape: s32[4], index: 1, kind: input, shape index: {}]
  %s2 = inlined_call_operand.vmem [shape: s32[4], index: 2, kind: input, shape index: {}]
  %s3 = inlined_call_operand.hbm [shape: f32[1000,128], index: 3, kind: input, shape index: {}]
  %s4 = inlined_call_operand.vmem [shape: f32[1024,128], index: 4, kind: input, shape index: {}]
  %s5 = inlined_call_operand.vmem [shape: f32[1024,128], index: 5, kind: input, shape index: {}]
  %s6 = inlined_call_operand.vmem [shape: s32[1024,1], index: 6, kind: input, shape index: {}]
  %s7 = inlined_call_operand.vmem [shape: s32[1024,1], index: 7, kind: input, shape index: {}]
  %s8 = inlined_call_operand.hbm [shape: f32[1000,128], index: 8, kind: output, shape index: {}]
  %s9 = sld [smem:[#allocation0]]
  $region65: #{tpu_custom_call.1} parent=0
    _
  %s11 = ssub.s32 1, %s9
  %s12 = scalar_select 0, %s11, %s9
  %s13 = sshll.u32 %s0, 4
  %s14 = int_to_ptr.vmem [resolvable:$true] %s13
  %16 = dma.vmem_to_smem %s14, 16, [#allocation4], [#allocation3]
  %s17 = sshll.u32 %s1, 4
  %s18 = int_to_ptr.vmem [resolvable:$true] %s17
  %20 = dma.vmem_to_smem %s18, 16, [#allocation5], [#allocation3]
  %s21 = sshll.u32 %s2, 4
  %s22 = int_to_ptr.vmem [resolvable:$true] %s21
  %24 = dma.vmem_to_smem %s22, 16, [#allocation6], [#allocation3]
  %25 = dma.done [#allocation3], 48
  %26 = sfence
  $region1: #{tpu_custom_call.1} parent=0
    #allocation7 [shape = 'u8[262144]{0}', space=vmem, size = 0x40000, scoped, tag = 'input window, operand 3']
    #allocation8 [shape = 's32[2]{0}', space=sflag, size = 0x8, scoped, tag = 'scoped memory for tpu_custom_call.1']
    #allocation9 [shape = 's32[2]{0}', space=sflag, size = 0x8, scoped, tag = 'scoped memory for tpu_custom_call.1']
    #allocation10 [shape = 'u8[262144]{0}', space=vmem, size = 0x40000, scoped, tag = 'output window, operand 0']
    %27 = vsyncpa [#allocation8], 0
    %s28 = scalar_lea.sflag [#allocation8], 1
    %29 = vsyncpa %s28, 0
    %30 = vsyncpa [#allocation9], 0
    %s31 = scalar_lea.sflag [#allocation9], 1
    %32 = vsyncpa %s31, 0
    loop: start=0, step=1, limit=6
    $region2: #{tpu_custom_call.1} parent=1 // loop_pre_header
      _
    $region3: #{tpu_custom_call.1} parent=1 // loop_header
      %s34 = sphi 0, %s38
      %p35 = scmp.ge.s32.totalorder %s34, 6
      %s44 = sphi 0, %s46
      %s47 = sphi 0, %s44
      %s48 = sphi 0, %s47
      %s64 = sphi 0, %s48
      %s72 = sphi 0, %s74
      %s75 = sphi 0, %s72
      %s76 = sphi 0, %s75
      %s92 = sphi 0, %s76
      %s102 = sphi 0, %s104
      %s105 = sphi 0, %s102
      %s106 = sphi 0, %s105
      %s122 = sphi 0, %s106
      %s128 = sphi 0, %s130
      %s131 = sphi 0, %s128
      %s132 = sphi 0, %s131
      %s148 = sphi 0, %s132
      %s154 = sphi 0, %s156
      %s157 = sphi 0, %s154
      %s158 = sphi 0, %s157
      %s174 = sphi 0, %s158
      %s180 = sphi 0, %s182
      %s183 = sphi 0, %s180
      %s184 = sphi 0, %s183
      %s200 = sphi 0, %s184
    $region4: #{tpu_custom_call.1} parent=1 // loop_header_branch
      %37 = sbr.rel (%p35) target = $region8
    $region5: #{tpu_custom_call.1} parent=1 // loop_body
      %s39 = ssub.s32 %s34, 1
      %s40 = ssub.s32 %s34, 2
      %s41 = sadd.s32 %s34, 1
      %s42 = ssub.s32 %s34, %s41
      %p43 = scmp.eq.s32.totalorder %s42, 0
      %s45 = sadd.s32 %s44, 1
      %s46 = scalar_select %p43, %s44, %s45
      %p49 = pneg %p43
      %p50 = scmp.eq.s32.totalorder %s34, 3
      %p51 = por %p49, %p50
      %p52 = scmp.ne.s32.totalorder %s44, %s47
      %p53 = scmp.eq.s32.totalorder %s34, 0
      %p54 = por %p52, %p53
      %p55 = scmp.ne.s32.totalorder %s44, %s47
      %p56 = scmp.eq.s32.totalorder %s39, 3
      %p57 = por %p55, %p56
      %p58 = scmp.ne.s32.totalorder %s47, %s48
      %p59 = scmp.eq.s32.totalorder %s39, 0
      %p60 = por %p58, %p59
      %p61 = scmp.ne.s32.totalorder %s47, %s48
      %p62 = scmp.eq.s32.totalorder %s40, 3
      %p63 = por %p61, %p62
      %p65 = scmp.ne.s32.totalorder %s48, %s64
      %p66 = scmp.eq.s32.totalorder %s40, 0
      %p67 = por %p65, %p66
      %s68 = sld [smem:[#allocation4 + %s34]]
      %s69 = sld [smem:[#allocation4 + %s41]]
      %s70 = ssub.s32 %s68, %s69
      %p71 = scmp.eq.s32.totalorder %s70, 0
      %s73 = sadd.s32 %s72, 1
      %s74 = scalar_select %p71, %s72, %s73
      %p77 = pneg %p71
      %p78 = scmp.eq.s32.totalorder %s34, 3
      %p79 = por %p77, %p78
      %p80 = scmp.ne.s32.totalorder %s72, %s75
      %p81 = scmp.eq.s32.totalorder %s34, 0
      %p82 = por %p80, %p81
      %p83 = scmp.ne.s32.totalorder %s72, %s75
      %p84 = scmp.eq.s32.totalorder %s39, 3
      %p85 = por %p83, %p84
      %p86 = scmp.ne.s32.totalorder %s75, %s76
      %p87 = scmp.eq.s32.totalorder %s39, 0
      %p88 = por %p86, %p87
      %p89 = scmp.ne.s32.totalorder %s75, %s76
      %p90 = scmp.eq.s32.totalorder %s40, 3
      %p91 = por %p89, %p90
      %p93 = scmp.ne.s32.totalorder %s76, %s92
      %p94 = scmp.eq.s32.totalorder %s40, 0
      %p95 = por %p93, %p94
      %s96 = sld [smem:[#allocation4 + %s34]]
      %s97 = sadd.s32 %s96, 1
      %s98 = sld [smem:[#allocation4 + %s41]]
      %s99 = sadd.s32 %s98, 1
      %s100 = ssub.s32 %s97, %s99
      %p101 = scmp.eq.s32.totalorder %s100, 0
      %s103 = sadd.s32 %s102, 1
      %s104 = scalar_select %p101, %s102, %s103
      %p107 = pneg %p101
      %p108 = scmp.eq.s32.totalorder %s34, 3
      %p109 = por %p107, %p108
      %p110 = scmp.ne.s32.totalorder %s102, %s105
      %p111 = scmp.eq.s32.totalorder %s34, 0
      %p112 = por %p110, %p111
      %p113 = scmp.ne.s32.totalorder %s102, %s105
      %p114 = scmp.eq.s32.totalorder %s39, 3
      %p115 = por %p113, %p114
      %p116 = scmp.ne.s32.totalorder %s105, %s106
      %p117 = scmp.eq.s32.totalorder %s39, 0
      %p118 = por %p116, %p117
      %p119 = scmp.ne.s32.totalorder %s105, %s106
      %p120 = scmp.eq.s32.totalorder %s40, 3
      %p121 = por %p119, %p120
      %p123 = scmp.ne.s32.totalorder %s106, %s122
      %p124 = scmp.eq.s32.totalorder %s40, 0
      %p125 = por %p123, %p124
      %s126 = ssub.s32 %s34, %s41
      %p127 = scmp.eq.s32.totalorder %s126, 0
      %s129 = sadd.s32 %s128, 1
      %s130 = scalar_select %p127, %s128, %s129
      %p133 = pneg %p127
      %p134 = scmp.eq.s32.totalorder %s34, 3
      %p135 = por %p133, %p134
      %p136 = scmp.ne.s32.totalorder %s128, %s131
      %p137 = scmp.eq.s32.totalorder %s34, 0
      %p138 = por %p136, %p137
      %p139 = scmp.ne.s32.totalorder %s128, %s131
      %p140 = scmp.eq.s32.totalorder %s39, 3
      %p141 = por %p139, %p140
      %p142 = scmp.ne.s32.totalorder %s131, %s132
      %p143 = scmp.eq.s32.totalorder %s39, 0
      %p144 = por %p142, %p143
      %p145 = scmp.ne.s32.totalorder %s131, %s132
      %p146 = scmp.eq.s32.totalorder %s40, 3
      %p147 = por %p145, %p146
      %p149 = scmp.ne.s32.totalorder %s132, %s148
      %p150 = scmp.eq.s32.totalorder %s40, 0
      %p151 = por %p149, %p150
      %s152 = ssub.s32 %s34, %s41
      %p153 = scmp.eq.s32.totalorder %s152, 0
      %s155 = sadd.s32 %s154, 1
      %s156 = scalar_select %p153, %s154, %s155
      %p159 = pneg %p153
      %p160 = scmp.eq.s32.totalorder %s34, 3
      %p161 = por %p159, %p160
      %p162 = scmp.ne.s32.totalorder %s154, %s157
      %p163 = scmp.eq.s32.totalorder %s34, 0
      %p164 = por %p162, %p163
      %p165 = scmp.ne.s32.totalorder %s154, %s157
      %p166 = scmp.eq.s32.totalorder %s39, 3
      %p167 = por %p165, %p166
      %p168 = scmp.ne.s32.totalorder %s157, %s158
      %p169 = scmp.eq.s32.totalorder %s39, 0
      %p170 = por %p168, %p169
      %p171 = scmp.ne.s32.totalorder %s157, %s158
      %p172 = scmp.eq.s32.totalorder %s40, 3
      %p173 = por %p171, %p172
      %p175 = scmp.ne.s32.totalorder %s158, %s174
      %p176 = scmp.eq.s32.totalorder %s40, 0
      %p177 = por %p175, %p176
      %s178 = ssub.s32 %s34, %s41
      %p179 = scmp.eq.s32.totalorder %s178, 0
      %s181 = sadd.s32 %s180, 1
      %s182 = scalar_select %p179, %s180, %s181
      %p185 = pneg %p179
      %p186 = scmp.eq.s32.totalorder %s34, 3
      %p187 = por %p185, %p186
      %p188 = scmp.ne.s32.totalorder %s180, %s183
      %p189 = scmp.eq.s32.totalorder %s34, 0
      %p190 = por %p188, %p189
      %p191 = scmp.ne.s32.totalorder %s180, %s183
      %p192 = scmp.eq.s32.totalorder %s39, 3
      %p193 = por %p191, %p192
      %p194 = scmp.ne.s32.totalorder %s183, %s184
      %p195 = scmp.eq.s32.totalorder %s39, 0
      %p196 = por %p194, %p195
      %p197 = scmp.ne.s32.totalorder %s183, %s184
      %p198 = scmp.eq.s32.totalorder %s40, 3
      %p199 = por %p197, %p198
      %p201 = scmp.ne.s32.totalorder %s184, %s200
      %p202 = scmp.eq.s32.totalorder %s40, 0
      %p203 = por %p201, %p202
      %p204 = scmp.le.s32.totalorder 1, %s34
      %p205 = scmp.lt.s32.totalorder %s34, 5
      %p206 = pnand %p204, %p205
      %p207 = pneg %p206
      // Predicated region
      $region9: #{tpu_custom_call.1} parent=5 // pred_check
        _
      $region10: #{tpu_custom_call.1} parent=5 // pred_check_branch
        %209 = sbr.rel (%p206) target = $region12
      $region11: #{tpu_custom_call.1} parent=5 // pred_region
        %s210 = ssub.s32 %s34, 1
      $region12: #{tpu_custom_call.1} parent=5 // pred_fallthru
        _
      %p211 = scmp.lt.s32.totalorder %s34, 4
      // Predicated region
      $region13: #{tpu_custom_call.1} parent=5 // pred_check
        %p212 = pneg %p211
      $region14: #{tpu_custom_call.1} parent=5 // pred_check_branch
        %214 = sbr.rel (%p212) target = $region16
      $region15: #{tpu_custom_call.1} parent=5 // pred_region
        // Predicated region
        $region17: #{tpu_custom_call.1} parent=15 // pred_check
          %p215 = pneg %p54
        $region18: #{tpu_custom_call.1} parent=15 // pred_check_branch
          %217 = sbr.rel (%p215) target = $region20
        $region19: #{tpu_custom_call.1} parent=15 // pred_region
          %s218 = sand.u32 %s44, 1
          %s219 = scalar_lea.sflag [#allocation8], %s218
          %s220 = sand.u32 %s44, 1
          %s221 = smul.addr %s220, 256
          %s222 = scalar_lea.vmem [#allocation7], %s221
          %s223 = smul.u32 32, %s34
          %s224 = ssub.s32 125, %s223
          %p225 = scmp.lt.s32.totalorder %s224, 32
          %s226 = scalar_select %p225, %s224, 32
          %s227 = smul.u32 128, %s226
          %s229 = ssub.s32 4096, %s227
          %230 = vsyncadd %s219, %s229
          %p231 = scmp.ne.s32.totalorder 0, %s227
          %s232 = smul.addr %s223, 128
          %s233 = scalar_lea.hbm %s3, %s232
          %s234 = smul.u32 8, %s226
          %s235 = sshll.u32 %s222, 4
          %s236 = int_to_ptr.vmem [resolvable:$true] %s235
          %s237 = sshll.u32 %s234, 4
          %241 = dma.hbm_to_vmem [thread:$0]  (%p231), %s233, %s237, %s236, %s219, 128, 128, 8
        $region20: #{tpu_custom_call.1} parent=15 // pred_fallthru
          _
        // Predicated region
        $region21: #{tpu_custom_call.1} parent=15 // pred_check
          %p242 = pneg %p82
        $region22: #{tpu_custom_call.1} parent=15 // pred_check_branch
          %244 = sbr.rel (%p242) target = $region24
        $region23: #{tpu_custom_call.1} parent=15 // pred_region
          %s245 = sld [smem:[#allocation4 + %s34]]
          %s246 = smul.u32 32, %s245
          %p247 = scmp.lt.s32.totalorder %s246, 127
          %s248 = scalar_select %p247, %s246, 127
          %s249 = smul.addr %s248, 8
          %s250 = scalar_lea.vmem %s4, %s249
          %s251 = sld [smem:[#allocation4 + %s34]]
          %s252 = smul.u32 32, %s251
        $region24: #{tpu_custom_call.1} parent=15 // pred_fallthru
          _
        // Predicated region
        $region25: #{tpu_custom_call.1} parent=15 // pred_check
          %p253 = pneg %p112
        $region26: #{tpu_custom_call.1} parent=15 // pred_check_branch
          %255 = sbr.rel (%p253) target = $region28
        $region27: #{tpu_custom_call.1} parent=15 // pred_region
          %s256 = sld [smem:[#allocation4 + %s34]]
          %s257 = sadd.s32 %s256, 1
          %s258 = smul.u32 32, %s257
          %p259 = scmp.lt.s32.totalorder %s258, 127
          %s260 = scalar_select %p259, %s258, 127
          %s261 = smul.addr %s260, 8
          %s262 = scalar_lea.vmem %s5, %s261
          %s263 = sld [smem:[#allocation4 + %s34]]
          %s264 = sadd.s32 %s263, 1
          %s265 = smul.u32 32, %s264
        $region28: #{tpu_custom_call.1} parent=15 // pred_fallthru
          _
        // Predicated region
        $region29: #{tpu_custom_call.1} parent=15 // pred_check
          %p266 = pneg %p138
        $region30: #{tpu_custom_call.1} parent=15 // pred_check_branch
          %268 = sbr.rel (%p266) target = $region32
        $region31: #{tpu_custom_call.1} parent=15 // pred_region
          %s269 = smul.u32 32, %s34
          %p270 = scmp.lt.s32.totalorder %s269, 127
          %s271 = scalar_select %p270, %s269, 127
          %s272 = smul.addr %s271, 8
          %s273 = scalar_lea.vmem %s6, %s272
          %s274 = smul.u32 32, %s34
        $region32: #{tpu_custom_call.1} parent=15 // pred_fallthru
          _
        // Predicated region
        $region33: #{tpu_custom_call.1} parent=15 // pred_check
          %p275 = pneg %p164
        $region34: #{tpu_custom_call.1} parent=15 // pred_check_branch
          %277 = sbr.rel (%p275) target = $region36
        $region35: #{tpu_custom_call.1} parent=15 // pred_region
          %s278 = smul.u32 32, %s34
          %p279 = scmp.lt.s32.totalorder %s278, 127
          %s280 = scalar_select %p279, %s278, 127
          %s281 = smul.addr %s280, 8
          %s282 = scalar_lea.vmem %s7, %s281
          %s283 = smul.u32 32, %s34
        $region36: #{tpu_custom_call.1} parent=15 // pred_fallthru
          _
      $region16: #{tpu_custom_call.1} parent=5 // pred_fallthru
        _
      %p284 = scmp.le.s32.totalorder 1, %s34
      %p285 = scmp.lt.s32.totalorder %s34, 5
      %p286 = pnand %p284, %p285
      %p287 = pneg %p286
      // Predicated region
      $region37: #{tpu_custom_call.1} parent=5 // pred_check
        _
      $region38: #{tpu_custom_call.1} parent=5 // pred_check_branch
        %289 = sbr.rel (%p286) target = $region40
      $region39: #{tpu_custom_call.1} parent=5 // pred_region
        %s290 = ssub.s32 %s34, 1
        %s291 = sand.u32 %s47, 1
        %s292 = scalar_lea.sflag [#allocation8], %s291
        %s293 = sand.u32 %s47, 1
        %s294 = smul.addr %s293, 256
        %s295 = scalar_lea.vmem [#allocation7], %s294
        // Predicated region
        $region41: #{tpu_custom_call.1} parent=39 // pred_check
          %p296 = pneg %p60
        $region42: #{tpu_custom_call.1} parent=39 // pred_check_branch
          %298 = sbr.rel (%p296) target = $region44
        $region43: #{tpu_custom_call.1} parent=39 // pred_region
          %299 = dma.done %s292, 4096
        $region44: #{tpu_custom_call.1} parent=39 // pred_fallthru
          _
        %s300 = sand.u32 %s47, 1
        %s301 = scalar_lea.sflag [#allocation8], %s300
        %s302 = sand.u32 %s47, 1
        %s303 = smul.addr %s302, 256
        %s304 = scalar_lea.vmem [#allocation7], %s303
        %p305 = pneg %p60
        %p306 = pneg %p57
        %s307 = sld [smem:[#allocation4 + %s39]]
        %s308 = smul.u32 32, %s307
        %p309 = scmp.lt.s32.totalorder %s308, 127
        %s310 = scalar_select %p309, %s308, 127
        %s311 = smul.addr %s310, 8
        %s312 = scalar_lea.vmem %s4, %s311
        %p313 = pneg %p88
        %p314 = pneg %p85
        %s315 = sld [smem:[#allocation4 + %s39]]
        %s316 = sadd.s32 %s315, 1
        %s317 = smul.u32 32, %s316
        %p318 = scmp.lt.s32.totalorder %s317, 127
        %s319 = scalar_select %p318, %s317, 127
        %s320 = smul.addr %s319, 8
        %s321 = scalar_lea.vmem %s5, %s320
        %p322 = pneg %p118
        %p323 = pneg %p115
        %s324 = smul.u32 32, %s39
        %p325 = scmp.lt.s32.totalorder %s324, 127
        %s326 = scalar_select %p325, %s324, 127
        %s327 = smul.addr %s326, 8
        %s328 = scalar_lea.vmem %s6, %s327
        %p329 = pneg %p144
        %p330 = pneg %p141
        %s331 = smul.u32 32, %s39
        %p332 = scmp.lt.s32.totalorder %s331, 127
        %s333 = scalar_select %p332, %s331, 127
        %s334 = smul.addr %s333, 8
        %s335 = scalar_lea.vmem %s7, %s334
        %p336 = pneg %p170
        %p337 = pneg %p167
        %p338 = pneg %p196
        %p339 = pneg %p193
        %s340 = sand.u32 %s183, 1
        %s341 = scalar_lea.sflag [#allocation9], %s340
        %s342 = sand.u32 %s183, 1
        %s343 = smul.addr %s342, 256
        %s344 = scalar_lea.vmem [#allocation10], %s343
        %s345 = smul.u32 32, %s39
        %s346 = ssub.s32 125, %s345
        %p347 = scmp.lt.s32.totalorder %s346, 32
        %s348 = scalar_select %p347, %s346, 32
        %s349 = smul.u32 128, %s348
        %s350 = sld [smem:[#allocation4 + %s39]]
        %s351 = smul.u32 32, %s350
        %p352 = scmp.lt.s32.totalorder %s351, 127
        %s353 = scalar_select %p352, %s351, 127
        %s354 = smul.addr %s353, 8
        %s355 = scalar_lea.vmem %s4, %s354
        %s356 = sld [smem:[#allocation4 + %s39]]
        %s357 = smul.u32 32, %s356
        %s358 = sld [smem:[#allocation4 + %s39]]
        %s359 = sadd.s32 %s358, 1
        %s360 = smul.u32 32, %s359
        %p361 = scmp.lt.s32.totalorder %s360, 127
        %s362 = scalar_select %p361, %s360, 127
        %s363 = smul.addr %s362, 8
        %s364 = scalar_lea.vmem %s5, %s363
        %s365 = sld [smem:[#allocation4 + %s39]]
        %s366 = sadd.s32 %s365, 1
        %s367 = smul.u32 32, %s366
        %s368 = smul.u32 32, %s39
        %p369 = scmp.lt.s32.totalorder %s368, 127
        %s370 = scalar_select %p369, %s368, 127
        %s371 = smul.addr %s370, 8
        %s372 = scalar_lea.vmem %s6, %s371
        %s373 = smul.u32 32, %s39
        %s374 = smul.u32 32, %s39
        %p375 = scmp.lt.s32.totalorder %s374, 127
        %s376 = scalar_select %p375, %s374, 127
        %s377 = smul.addr %s376, 8
        %s378 = scalar_lea.vmem %s7, %s377
        %s379 = smul.u32 32, %s39
        %s380 = smul.u32 32, %s39
        %s381 = ssub.s32 125, %s380
        %p382 = scmp.lt.s32.totalorder %s381, 32
        %s383 = scalar_select %p382, %s381, 32
        %s384 = smul.u32 128, %s383
        %s386 = sld [smem:[#allocation6 + %s39]]
        %p387 = scmp.eq.s32.totalorder %s386, 0
        // Predicated region
        $region45: #{tpu_custom_call.1} parent=39 // pred_check
          %p388 = pneg %p387
        $region46: #{tpu_custom_call.1} parent=39 // pred_check_branch
          %390 = sbr.rel (%p388) target = $region48
        $region47: #{tpu_custom_call.1} parent=39 // pred_region
          %v391 = vld [vmem:[%s295] sm:$0xff]
          %v392 = vld [vmem:[%s295 + $0x8] sm:$0xff]
          %v393 = vld [vmem:[%s295 + $0x10] sm:$0xff]
          %v394 = vld [vmem:[%s295 + $0x18] sm:$0xff]
          %v395 = vld [vmem:[%s295 + $0x20] sm:$0xff]
          %v396 = vld [vmem:[%s295 + $0x28] sm:$0xff]
          %v397 = vld [vmem:[%s295 + $0x30] sm:$0xff]
          %v398 = vld [vmem:[%s295 + $0x38] sm:$0xff]
          %v399 = vld [vmem:[%s295 + $0x40] sm:$0xff]
          %v400 = vld [vmem:[%s295 + $0x48] sm:$0xff]
          %v401 = vld [vmem:[%s295 + $0x50] sm:$0xff]
          %v402 = vld [vmem:[%s295 + $0x58] sm:$0xff]
          %v403 = vld [vmem:[%s295 + $0x60] sm:$0xff]
          %v404 = vld [vmem:[%s295 + $0x68] sm:$0xff]
          %v405 = vld [vmem:[%s295 + $0x70] sm:$0xff]
          %v406 = vld [vmem:[%s295 + $0x78] sm:$0xff]
          %v407 = vld [vmem:[%s295 + $0x80] sm:$0xff]
          %v408 = vld [vmem:[%s295 + $0x88] sm:$0xff]
          %v409 = vld [vmem:[%s295 + $0x90] sm:$0xff]
          %v410 = vld [vmem:[%s295 + $0x98] sm:$0xff]
          %v411 = vld [vmem:[%s295 + $0xa0] sm:$0xff]
          %v412 = vld [vmem:[%s295 + $0xa8] sm:$0xff]
          %v413 = vld [vmem:[%s295 + $0xb0] sm:$0xff]
          %v414 = vld [vmem:[%s295 + $0xb8] sm:$0xff]
          %v415 = vld [vmem:[%s295 + $0xc0] sm:$0xff]
          %v416 = vld [vmem:[%s295 + $0xc8] sm:$0xff]
          %v417 = vld [vmem:[%s295 + $0xd0] sm:$0xff]
          %v418 = vld [vmem:[%s295 + $0xd8] sm:$0xff]
          %v419 = vld [vmem:[%s295 + $0xe0] sm:$0xff]
          %v420 = vld [vmem:[%s295 + $0xe8] sm:$0xff]
          %v421 = vld [vmem:[%s295 + $0xf0] sm:$0xff]
          %v422 = vld [vmem:[%s295 + $0xf8] sm:$0xff]
          %423 = vst [vmem:[%s344] sm:$0xff] %v391
          %424 = vst [vmem:[%s344 + $0x8] sm:$0xff] %v392
          %425 = vst [vmem:[%s344 + $0x10] sm:$0xff] %v393
          %426 = vst [vmem:[%s344 + $0x18] sm:$0xff] %v394
          %427 = vst [vmem:[%s344 + $0x20] sm:$0xff] %v395
          %428 = vst [vmem:[%s344 + $0x28] sm:$0xff] %v396
          %429 = vst [vmem:[%s344 + $0x30] sm:$0xff] %v397
          %430 = vst [vmem:[%s344 + $0x38] sm:$0xff] %v398
          %431 = vst [vmem:[%s344 + $0x40] sm:$0xff] %v399
          %432 = vst [vmem:[%s344 + $0x48] sm:$0xff] %v400
          %433 = vst [vmem:[%s344 + $0x50] sm:$0xff] %v401
          %434 = vst [vmem:[%s344 + $0x58] sm:$0xff] %v402
          %435 = vst [vmem:[%s344 + $0x60] sm:$0xff] %v403
          %436 = vst [vmem:[%s344 + $0x68] sm:$0xff] %v404
          %437 = vst [vmem:[%s344 + $0x70] sm:$0xff] %v405
          %438 = vst [vmem:[%s344 + $0x78] sm:$0xff] %v406
          %439 = vst [vmem:[%s344 + $0x80] sm:$0xff] %v407
          %440 = vst [vmem:[%s344 + $0x88] sm:$0xff] %v408
          %441 = vst [vmem:[%s344 + $0x90] sm:$0xff] %v409
          %442 = vst [vmem:[%s344 + $0x98] sm:$0xff] %v410
          %443 = vst [vmem:[%s344 + $0xa0] sm:$0xff] %v411
          %444 = vst [vmem:[%s344 + $0xa8] sm:$0xff] %v412
          %445 = vst [vmem:[%s344 + $0xb0] sm:$0xff] %v413
          %446 = vst [vmem:[%s344 + $0xb8] sm:$0xff] %v414
          %447 = vst [vmem:[%s344 + $0xc0] sm:$0xff] %v415
          %448 = vst [vmem:[%s344 + $0xc8] sm:$0xff] %v416
          %449 = vst [vmem:[%s344 + $0xd0] sm:$0xff] %v417
          %450 = vst [vmem:[%s344 + $0xd8] sm:$0xff] %v418
          %451 = vst [vmem:[%s344 + $0xe0] sm:$0xff] %v419
          %452 = vst [vmem:[%s344 + $0xe8] sm:$0xff] %v420
          %453 = vst [vmem:[%s344 + $0xf0] sm:$0xff] %v421
          %454 = vst [vmem:[%s344 + $0xf8] sm:$0xff] %v422
        $region48: #{tpu_custom_call.1} parent=39 // pred_fallthru
          _
        %s455 = sld [smem:[#allocation6 + %s39]]
        %p456 = scmp.gt.s32.totalorder %s455, 0
        // Predicated region
        $region49: #{tpu_custom_call.1} parent=39 // pred_check
          %p457 = pneg %p456
        $region50: #{tpu_custom_call.1} parent=39 // pred_check_branch
          %459 = sbr.rel (%p457) target = $region52
        $region51: #{tpu_custom_call.1} parent=39 // pred_region
          %v460 = vld [vmem:[%s355] sm:$0xff]
          %v461 = vld [vmem:[%s355 + $0x8] sm:$0xff]
          %v462 = vld [vmem:[%s355 + $0x10] sm:$0xff]
          %v463 = vld [vmem:[%s355 + $0x18] sm:$0xff]
          %v464 = vld [vmem:[%s355 + $0x20] sm:$0xff]
          %v465 = vld [vmem:[%s355 + $0x28] sm:$0xff]
          %v466 = vld [vmem:[%s355 + $0x30] sm:$0xff]
          %v467 = vld [vmem:[%s355 + $0x38] sm:$0xff]
          %v468 = vld [vmem:[%s355 + $0x40] sm:$0xff]
          %v469 = vld [vmem:[%s355 + $0x48] sm:$0xff]
          %v470 = vld [vmem:[%s355 + $0x50] sm:$0xff]
          %v471 = vld [vmem:[%s355 + $0x58] sm:$0xff]
          %v472 = vld [vmem:[%s355 + $0x60] sm:$0xff]
          %v473 = vld [vmem:[%s355 + $0x68] sm:$0xff]
          %v474 = vld [vmem:[%s355 + $0x70] sm:$0xff]
          %v475 = vld [vmem:[%s355 + $0x78] sm:$0xff]
          %v476 = vld [vmem:[%s355 + $0x80] sm:$0xff]
          %v477 = vld [vmem:[%s355 + $0x88] sm:$0xff]
          %v478 = vld [vmem:[%s355 + $0x90] sm:$0xff]
          %v479 = vld [vmem:[%s355 + $0x98] sm:$0xff]
          %v480 = vld [vmem:[%s355 + $0xa0] sm:$0xff]
          %v481 = vld [vmem:[%s355 + $0xa8] sm:$0xff]
          %v482 = vld [vmem:[%s355 + $0xb0] sm:$0xff]
          %v483 = vld [vmem:[%s355 + $0xb8] sm:$0xff]
          %v484 = vld [vmem:[%s355 + $0xc0] sm:$0xff]
          %v485 = vld [vmem:[%s355 + $0xc8] sm:$0xff]
          %v486 = vld [vmem:[%s355 + $0xd0] sm:$0xff]
          %v487 = vld [vmem:[%s355 + $0xd8] sm:$0xff]
          %v488 = vld [vmem:[%s355 + $0xe0] sm:$0xff]
          %v489 = vld [vmem:[%s355 + $0xe8] sm:$0xff]
          %v490 = vld [vmem:[%s355 + $0xf0] sm:$0xff]
          %v491 = vld [vmem:[%s355 + $0xf8] sm:$0xff]
          %492 = vst [vmem:[#allocation2] sm:$0xff] %v460
          %493 = vst [vmem:[#allocation2 + $0x8] sm:$0xff] %v461
          %494 = vst [vmem:[#allocation2 + $0x10] sm:$0xff] %v462
          %495 = vst [vmem:[#allocation2 + $0x18] sm:$0xff] %v463
          %496 = vst [vmem:[#allocation2 + $0x20] sm:$0xff] %v464
          %497 = vst [vmem:[#allocation2 + $0x28] sm:$0xff] %v465
          %498 = vst [vmem:[#allocation2 + $0x30] sm:$0xff] %v466
          %499 = vst [vmem:[#allocation2 + $0x38] sm:$0xff] %v467
          %500 = vst [vmem:[#allocation2 + $0x40] sm:$0xff] %v468
          %501 = vst [vmem:[#allocation2 + $0x48] sm:$0xff] %v469
          %502 = vst [vmem:[#allocation2 + $0x50] sm:$0xff] %v470
          %503 = vst [vmem:[#allocation2 + $0x58] sm:$0xff] %v471
          %504 = vst [vmem:[#allocation2 + $0x60] sm:$0xff] %v472
          %505 = vst [vmem:[#allocation2 + $0x68] sm:$0xff] %v473
          %506 = vst [vmem:[#allocation2 + $0x70] sm:$0xff] %v474
          %507 = vst [vmem:[#allocation2 + $0x78] sm:$0xff] %v475
          %508 = vst [vmem:[#allocation2 + $0x80] sm:$0xff] %v476
          %509 = vst [vmem:[#allocation2 + $0x88] sm:$0xff] %v477
          %510 = vst [vmem:[#allocation2 + $0x90] sm:$0xff] %v478
          %511 = vst [vmem:[#allocation2 + $0x98] sm:$0xff] %v479
          %512 = vst [vmem:[#allocation2 + $0xa0] sm:$0xff] %v480
          %513 = vst [vmem:[#allocation2 + $0xa8] sm:$0xff] %v481
          %514 = vst [vmem:[#allocation2 + $0xb0] sm:$0xff] %v482
          %515 = vst [vmem:[#allocation2 + $0xb8] sm:$0xff] %v483
          %516 = vst [vmem:[#allocation2 + $0xc0] sm:$0xff] %v484
          %517 = vst [vmem:[#allocation2 + $0xc8] sm:$0xff] %v485
          %518 = vst [vmem:[#allocation2 + $0xd0] sm:$0xff] %v486
          %519 = vst [vmem:[#allocation2 + $0xd8] sm:$0xff] %v487
          %520 = vst [vmem:[#allocation2 + $0xe0] sm:$0xff] %v488
          %521 = vst [vmem:[#allocation2 + $0xe8] sm:$0xff] %v489
          %522 = vst [vmem:[#allocation2 + $0xf0] sm:$0xff] %v490
          %523 = vst [vmem:[#allocation2 + $0xf8] sm:$0xff] %v491
          %v524 = vld [vmem:[%s364] sm:$0xff]
          %v525 = vld [vmem:[%s364 + $0x8] sm:$0xff]
          %v526 = vld [vmem:[%s364 + $0x10] sm:$0xff]
          %v527 = vld [vmem:[%s364 + $0x18] sm:$0xff]
          %v528 = vld [vmem:[%s364 + $0x20] sm:$0xff]
          %v529 = vld [vmem:[%s364 + $0x28] sm:$0xff]
          %v530 = vld [vmem:[%s364 + $0x30] sm:$0xff]
          %v531 = vld [vmem:[%s364 + $0x38] sm:$0xff]
          %v532 = vld [vmem:[%s364 + $0x40] sm:$0xff]
          %v533 = vld [vmem:[%s364 + $0x48] sm:$0xff]
          %v534 = vld [vmem:[%s364 + $0x50] sm:$0xff]
          %v535 = vld [vmem:[%s364 + $0x58] sm:$0xff]
          %v536 = vld [vmem:[%s364 + $0x60] sm:$0xff]
          %v537 = vld [vmem:[%s364 + $0x68] sm:$0xff]
          %v538 = vld [vmem:[%s364 + $0x70] sm:$0xff]
          %v539 = vld [vmem:[%s364 + $0x78] sm:$0xff]
          %v540 = vld [vmem:[%s364 + $0x80] sm:$0xff]
          %v541 = vld [vmem:[%s364 + $0x88] sm:$0xff]
          %v542 = vld [vmem:[%s364 + $0x90] sm:$0xff]
          %v543 = vld [vmem:[%s364 + $0x98] sm:$0xff]
          %v544 = vld [vmem:[%s364 + $0xa0] sm:$0xff]
          %v545 = vld [vmem:[%s364 + $0xa8] sm:$0xff]
          %v546 = vld [vmem:[%s364 + $0xb0] sm:$0xff]
          %v547 = vld [vmem:[%s364 + $0xb8] sm:$0xff]
          %v548 = vld [vmem:[%s364 + $0xc0] sm:$0xff]
          %v549 = vld [vmem:[%s364 + $0xc8] sm:$0xff]
          %v550 = vld [vmem:[%s364 + $0xd0] sm:$0xff]
          %v551 = vld [vmem:[%s364 + $0xd8] sm:$0xff]
          %v552 = vld [vmem:[%s364 + $0xe0] sm:$0xff]
          %v553 = vld [vmem:[%s364 + $0xe8] sm:$0xff]
          %v554 = vld [vmem:[%s364 + $0xf0] sm:$0xff]
          %v555 = vld [vmem:[%s364 + $0xf8] sm:$0xff]
          %556 = vst [vmem:[#allocation2 + $0x100] sm:$0xff] %v524
          %557 = vst [vmem:[#allocation2 + $0x108] sm:$0xff] %v525
          %558 = vst [vmem:[#allocation2 + $0x110] sm:$0xff] %v526
          %559 = vst [vmem:[#allocation2 + $0x118] sm:$0xff] %v527
          %560 = vst [vmem:[#allocation2 + $0x120] sm:$0xff] %v528
          %561 = vst [vmem:[#allocation2 + $0x128] sm:$0xff] %v529
          %562 = vst [vmem:[#allocation2 + $0x130] sm:$0xff] %v530
          %563 = vst [vmem:[#allocation2 + $0x138] sm:$0xff] %v531
          %564 = vst [vmem:[#allocation2 + $0x140] sm:$0xff] %v532
          %565 = vst [vmem:[#allocation2 + $0x148] sm:$0xff] %v533
          %566 = vst [vmem:[#allocation2 + $0x150] sm:$0xff] %v534
          %567 = vst [vmem:[#allocation2 + $0x158] sm:$0xff] %v535
          %568 = vst [vmem:[#allocation2 + $0x160] sm:$0xff] %v536
          %569 = vst [vmem:[#allocation2 + $0x168] sm:$0xff] %v537
          %570 = vst [vmem:[#allocation2 + $0x170] sm:$0xff] %v538
          %571 = vst [vmem:[#allocation2 + $0x178] sm:$0xff] %v539
          %572 = vst [vmem:[#allocation2 + $0x180] sm:$0xff] %v540
          %573 = vst [vmem:[#allocation2 + $0x188] sm:$0xff] %v541
          %574 = vst [vmem:[#allocation2 + $0x190] sm:$0xff] %v542
          %575 = vst [vmem:[#allocation2 + $0x198] sm:$0xff] %v543
          %576 = vst [vmem:[#allocation2 + $0x1a0] sm:$0xff] %v544
          %577 = vst [vmem:[#allocation2 + $0x1a8] sm:$0xff] %v545
          %578 = vst [vmem:[#allocation2 + $0x1b0] sm:$0xff] %v546
          %579 = vst [vmem:[#allocation2 + $0x1b8] sm:$0xff] %v547
          %580 = vst [vmem:[#allocation2 + $0x1c0] sm:$0xff] %v548
          %581 = vst [vmem:[#allocation2 + $0x1c8] sm:$0xff] %v549
          %582 = vst [vmem:[#allocation2 + $0x1d0] sm:$0xff] %v550
          %583 = vst [vmem:[#allocation2 + $0x1d8] sm:$0xff] %v551
          %584 = vst [vmem:[#allocation2 + $0x1e0] sm:$0xff] %v552
          %585 = vst [vmem:[#allocation2 + $0x1e8] sm:$0xff] %v553
          %586 = vst [vmem:[#allocation2 + $0x1f0] sm:$0xff] %v554
          %587 = vst [vmem:[#allocation2 + $0x1f8] sm:$0xff] %v555
          %s588 = sld [smem:[#allocation5 + %s39]]
          %s589 = scalar_lea.vmem [#allocation2], %s588
          %v590 = vld [vmem:[%s589] sm:$0xff]
          %v591 = vld [vmem:[%s589 + $0x8] sm:$0xff]
          %v592 = vld [vmem:[%s589 + $0x10] sm:$0xff]
          %v593 = vld [vmem:[%s589 + $0x18] sm:$0xff]
          %v594 = vld [vmem:[%s589 + $0x20] sm:$0xff]
          %v595 = vld [vmem:[%s589 + $0x28] sm:$0xff]
          %v596 = vld [vmem:[%s589 + $0x30] sm:$0xff]
          %v597 = vld [vmem:[%s589 + $0x38] sm:$0xff]
          %v598 = vld [vmem:[%s589 + $0x40] sm:$0xff]
          %v599 = vld [vmem:[%s589 + $0x48] sm:$0xff]
          %v600 = vld [vmem:[%s589 + $0x50] sm:$0xff]
          %v601 = vld [vmem:[%s589 + $0x58] sm:$0xff]
          %v602 = vld [vmem:[%s589 + $0x60] sm:$0xff]
          %v603 = vld [vmem:[%s589 + $0x68] sm:$0xff]
          %v604 = vld [vmem:[%s589 + $0x70] sm:$0xff]
          %v605 = vld [vmem:[%s589 + $0x78] sm:$0xff]
          %v606 = vld [vmem:[%s589 + $0x80] sm:$0xff]
          %v607 = vld [vmem:[%s589 + $0x88] sm:$0xff]
          %v608 = vld [vmem:[%s589 + $0x90] sm:$0xff]
          %v609 = vld [vmem:[%s589 + $0x98] sm:$0xff]
          %v610 = vld [vmem:[%s589 + $0xa0] sm:$0xff]
          %v611 = vld [vmem:[%s589 + $0xa8] sm:$0xff]
          %v612 = vld [vmem:[%s589 + $0xb0] sm:$0xff]
          %v613 = vld [vmem:[%s589 + $0xb8] sm:$0xff]
          %v614 = vld [vmem:[%s589 + $0xc0] sm:$0xff]
          %v615 = vld [vmem:[%s589 + $0xc8] sm:$0xff]
          %v616 = vld [vmem:[%s589 + $0xd0] sm:$0xff]
          %v617 = vld [vmem:[%s589 + $0xd8] sm:$0xff]
          %v618 = vld [vmem:[%s589 + $0xe0] sm:$0xff]
          %v619 = vld [vmem:[%s589 + $0xe8] sm:$0xff]
          %v620 = vld [vmem:[%s589 + $0xf0] sm:$0xff]
          %v621 = vld [vmem:[%s589 + $0xf8] sm:$0xff]
          %v622 = vld [vmem:[%s589 + $0x100] sm:$0xff]
          %v623 = vld [vmem:[%s589 + $0x108] sm:$0xff]
          %v624 = vld [vmem:[%s378] sm:$0xff]
          %v625 = vld [vmem:[%s378 + $0x8] sm:$0xff]
          %v626 = vld [vmem:[%s378 + $0x10] sm:$0xff]
          %v627 = vld [vmem:[%s378 + $0x18] sm:$0xff]
          %v628 = vld [vmem:[%s378 + $0x20] sm:$0xff]
          %v629 = vld [vmem:[%s378 + $0x28] sm:$0xff]
          %v630 = vld [vmem:[%s378 + $0x30] sm:$0xff]
          %v631 = vld [vmem:[%s378 + $0x38] sm:$0xff]
          %v632 = vld [vmem:[%s378 + $0x40] sm:$0xff]
          %v633 = vld [vmem:[%s378 + $0x48] sm:$0xff]
          %v634 = vld [vmem:[%s378 + $0x50] sm:$0xff]
          %v635 = vld [vmem:[%s378 + $0x58] sm:$0xff]
          %v636 = vld [vmem:[%s378 + $0x60] sm:$0xff]
          %v637 = vld [vmem:[%s378 + $0x68] sm:$0xff]
          %v638 = vld [vmem:[%s378 + $0x70] sm:$0xff]
          %v639 = vld [vmem:[%s378 + $0x78] sm:$0xff]
          %v640 = vld [vmem:[%s378 + $0x80] sm:$0xff]
          %v641 = vld [vmem:[%s378 + $0x88] sm:$0xff]
          %v642 = vld [vmem:[%s378 + $0x90] sm:$0xff]
          %v643 = vld [vmem:[%s378 + $0x98] sm:$0xff]
          %v644 = vld [vmem:[%s378 + $0xa0] sm:$0xff]
          %v645 = vld [vmem:[%s378 + $0xa8] sm:$0xff]
          %v646 = vld [vmem:[%s378 + $0xb0] sm:$0xff]
          %v647 = vld [vmem:[%s378 + $0xb8] sm:$0xff]
          %v648 = vld [vmem:[%s378 + $0xc0] sm:$0xff]
          %v649 = vld [vmem:[%s378 + $0xc8] sm:$0xff]
          %v650 = vld [vmem:[%s378 + $0xd0] sm:$0xff]
          %v651 = vld [vmem:[%s378 + $0xd8] sm:$0xff]
          %v652 = vld [vmem:[%s378 + $0xe0] sm:$0xff]
          %v653 = vld [vmem:[%s378 + $0xe8] sm:$0xff]
          %v654 = vld [vmem:[%s378 + $0xf0] sm:$0xff]
          %v655 = vld [vmem:[%s378 + $0xf8] sm:$0xff]
          %v656 = vlaneseq
          %v657 = vand.u32 %v656, 127
          %v658 = vadd.s32 %v657, 128
          %v659 = vadd.s32 %v657, 256
          %660 = vset.pattern.permute.xlu0 0
          %661 = vperm.xlu0 %660, %v624
          %v662 = vpop.permute.xlu0 %661
          %663 = vset.pattern.permute.xlu0 0
          %664 = vperm.xlu0 %663, %v625
          %v665 = vpop.permute.xlu0 %664
          %666 = vset.pattern.permute.xlu0 0
          %667 = vperm.xlu0 %666, %v626
          %v668 = vpop.permute.xlu0 %667
          %669 = vset.pattern.permute.xlu0 0
          %670 = vperm.xlu0 %669, %v627
          %v671 = vpop.permute.xlu0 %670
          %672 = vset.pattern.permute.xlu0 0
          %673 = vperm.xlu0 %672, %v628
          %v674 = vpop.permute.xlu0 %673
          %675 = vset.pattern.permute.xlu0 0
          %676 = vperm.xlu0 %675, %v629
          %v677 = vpop.permute.xlu0 %676
          %678 = vset.pattern.permute.xlu0 0
          %679 = vperm.xlu0 %678, %v630
          %v680 = vpop.permute.xlu0 %679
          %681 = vset.pattern.permute.xlu0 0
          %682 = vperm.xlu0 %681, %v631
          %v683 = vpop.permute.xlu0 %682
          %684 = vset.pattern.permute.xlu0 0
          %685 = vperm.xlu0 %684, %v632
          %v686 = vpop.permute.xlu0 %685
          %687 = vset.pattern.permute.xlu0 0
          %688 = vperm.xlu0 %687, %v633
          %v689 = vpop.permute.xlu0 %688
          %690 = vset.pattern.permute.xlu0 0
          %691 = vperm.xlu0 %690, %v634
          %v692 = vpop.permute.xlu0 %691
          %693 = vset.pattern.permute.xlu0 0
          %694 = vperm.xlu0 %693, %v635
          %v695 = vpop.permute.xlu0 %694
          %696 = vset.pattern.permute.xlu0 0
          %697 = vperm.xlu0 %696, %v636
          %v698 = vpop.permute.xlu0 %697
          %699 = vset.pattern.permute.xlu0 0
          %700 = vperm.xlu0 %699, %v637
          %v701 = vpop.permute.xlu0 %700
          %702 = vset.pattern.permute.xlu0 0
          %703 = vperm.xlu0 %702, %v638
          %v704 = vpop.permute.xlu0 %703
          %705 = vset.pattern.permute.xlu0 0
          %706 = vperm.xlu0 %705, %v639
          %v707 = vpop.permute.xlu0 %706
          %708 = vset.pattern.permute.xlu0 0
          %709 = vperm.xlu0 %708, %v640
          %v710 = vpop.permute.xlu0 %709
          %711 = vset.pattern.permute.xlu0 0
          %712 = vperm.xlu0 %711, %v641
          %v713 = vpop.permute.xlu0 %712
          %714 = vset.pattern.permute.xlu0 0
          %715 = vperm.xlu0 %714, %v642
          %v716 = vpop.permute.xlu0 %715
          %717 = vset.pattern.permute.xlu0 0
          %718 = vperm.xlu0 %717, %v643
          %v719 = vpop.permute.xlu0 %718
          %720 = vset.pattern.permute.xlu0 0
          %721 = vperm.xlu0 %720, %v644
          %v722 = vpop.permute.xlu0 %721
          %723 = vset.pattern.permute.xlu0 0
          %724 = vperm.xlu0 %723, %v645
          %v725 = vpop.permute.xlu0 %724
          %726 = vset.pattern.permute.xlu0 0
          %727 = vperm.xlu0 %726, %v646
          %v728 = vpop.permute.xlu0 %727
          %729 = vset.pattern.permute.xlu0 0
          %730 = vperm.xlu0 %729, %v647
          %v731 = vpop.permute.xlu0 %730
          %732 = vset.pattern.permute.xlu0 0
          %733 = vperm.xlu0 %732, %v648
          %v734 = vpop.permute.xlu0 %733
          %735 = vset.pattern.permute.xlu0 0
          %736 = vperm.xlu0 %735, %v649
          %v737 = vpop.permute.xlu0 %736
          %738 = vset.pattern.permute.xlu0 0
          %739 = vperm.xlu0 %738, %v650
          %v740 = vpop.permute.xlu0 %739
          %741 = vset.pattern.permute.xlu0 0
          %742 = vperm.xlu0 %741, %v651
          %v743 = vpop.permute.xlu0 %742
          %744 = vset.pattern.permute.xlu0 0
          %745 = vperm.xlu0 %744, %v652
          %v746 = vpop.permute.xlu0 %745
          %747 = vset.pattern.permute.xlu0 0
          %748 = vperm.xlu0 %747, %v653
          %v749 = vpop.permute.xlu0 %748
          %750 = vset.pattern.permute.xlu0 0
          %751 = vperm.xlu0 %750, %v654
          %v752 = vpop.permute.xlu0 %751
          %753 = vset.pattern.permute.xlu0 0
          %754 = vperm.xlu0 %753, %v655
          %v755 = vpop.permute.xlu0 %754
          %vm756 = vcmp.eq.s32.totalorder %v657, %v662
          %vm757 = vcmp.eq.s32.totalorder %v658, %v662
          %vm758 = vcmp.eq.s32.totalorder %v659, %v662
          %vm759 = vcmp.eq.s32.totalorder %v657, %v665
          %vm760 = vcmp.eq.s32.totalorder %v658, %v665
          %vm761 = vcmp.eq.s32.totalorder %v659, %v665
          %vm762 = vcmp.eq.s32.totalorder %v657, %v668
          %vm763 = vcmp.eq.s32.totalorder %v658, %v668
          %vm764 = vcmp.eq.s32.totalorder %v659, %v668
          %vm765 = vcmp.eq.s32.totalorder %v657, %v671
          %vm766 = vcmp.eq.s32.totalorder %v658, %v671
          %vm767 = vcmp.eq.s32.totalorder %v659, %v671
          %vm768 = vcmp.eq.s32.totalorder %v657, %v674
          %vm769 = vcmp.eq.s32.totalorder %v658, %v674
          %vm770 = vcmp.eq.s32.totalorder %v659, %v674
          %vm771 = vcmp.eq.s32.totalorder %v657, %v677
          %vm772 = vcmp.eq.s32.totalorder %v658, %v677
          %vm773 = vcmp.eq.s32.totalorder %v659, %v677
          %vm774 = vcmp.eq.s32.totalorder %v657, %v680
          %vm775 = vcmp.eq.s32.totalorder %v658, %v680
          %vm776 = vcmp.eq.s32.totalorder %v659, %v680
          %vm777 = vcmp.eq.s32.totalorder %v657, %v683
          %vm778 = vcmp.eq.s32.totalorder %v658, %v683
          %vm779 = vcmp.eq.s32.totalorder %v659, %v683
          %vm780 = vcmp.eq.s32.totalorder %v657, %v686
          %vm781 = vcmp.eq.s32.totalorder %v658, %v686
          %vm782 = vcmp.eq.s32.totalorder %v659, %v686
          %vm783 = vcmp.eq.s32.totalorder %v657, %v689
          %vm784 = vcmp.eq.s32.totalorder %v658, %v689
          %vm785 = vcmp.eq.s32.totalorder %v659, %v689
          %vm786 = vcmp.eq.s32.totalorder %v657, %v692
          %vm787 = vcmp.eq.s32.totalorder %v658, %v692
          %vm788 = vcmp.eq.s32.totalorder %v659, %v692
          %vm789 = vcmp.eq.s32.totalorder %v657, %v695
          %vm790 = vcmp.eq.s32.totalorder %v658, %v695
          %vm791 = vcmp.eq.s32.totalorder %v659, %v695
          %vm792 = vcmp.eq.s32.totalorder %v657, %v698
          %vm793 = vcmp.eq.s32.totalorder %v658, %v698
          %vm794 = vcmp.eq.s32.totalorder %v659, %v698
          %vm795 = vcmp.eq.s32.totalorder %v657, %v701
          %vm796 = vcmp.eq.s32.totalorder %v658, %v701
          %vm797 = vcmp.eq.s32.totalorder %v659, %v701
          %vm798 = vcmp.eq.s32.totalorder %v657, %v704
          %vm799 = vcmp.eq.s32.totalorder %v658, %v704
          %vm800 = vcmp.eq.s32.totalorder %v659, %v704
          %vm801 = vcmp.eq.s32.totalorder %v657, %v707
          %vm802 = vcmp.eq.s32.totalorder %v658, %v707
          %vm803 = vcmp.eq.s32.totalorder %v659, %v707
          %vm804 = vcmp.eq.s32.totalorder %v657, %v710
          %vm805 = vcmp.eq.s32.totalorder %v658, %v710
          %vm806 = vcmp.eq.s32.totalorder %v659, %v710
          %vm807 = vcmp.eq.s32.totalorder %v657, %v713
          %vm808 = vcmp.eq.s32.totalorder %v658, %v713
          %vm809 = vcmp.eq.s32.totalorder %v659, %v713
          %vm810 = vcmp.eq.s32.totalorder %v657, %v716
          %vm811 = vcmp.eq.s32.totalorder %v658, %v716
          %vm812 = vcmp.eq.s32.totalorder %v659, %v716
          %vm813 = vcmp.eq.s32.totalorder %v657, %v719
          %vm814 = vcmp.eq.s32.totalorder %v658, %v719
          %vm815 = vcmp.eq.s32.totalorder %v659, %v719
          %vm816 = vcmp.eq.s32.totalorder %v657, %v722
          %vm817 = vcmp.eq.s32.totalorder %v658, %v722
          %vm818 = vcmp.eq.s32.totalorder %v659, %v722
          %vm819 = vcmp.eq.s32.totalorder %v657, %v725
          %vm820 = vcmp.eq.s32.totalorder %v658, %v725
          %vm821 = vcmp.eq.s32.totalorder %v659, %v725
          %vm822 = vcmp.eq.s32.totalorder %v657, %v728
          %vm823 = vcmp.eq.s32.totalorder %v658, %v728
          %vm824 = vcmp.eq.s32.totalorder %v659, %v728
          %vm825 = vcmp.eq.s32.totalorder %v657, %v731
          %vm826 = vcmp.eq.s32.totalorder %v658, %v731
          %vm827 = vcmp.eq.s32.totalorder %v659, %v731
          %vm828 = vcmp.eq.s32.totalorder %v657, %v734
          %vm829 = vcmp.eq.s32.totalorder %v658, %v734
          %vm830 = vcmp.eq.s32.totalorder %v659, %v734
          %vm831 = vcmp.eq.s32.totalorder %v657, %v737
          %vm832 = vcmp.eq.s32.totalorder %v658, %v737
          %vm833 = vcmp.eq.s32.totalorder %v659, %v737
          %vm834 = vcmp.eq.s32.totalorder %v657, %v740
          %vm835 = vcmp.eq.s32.totalorder %v658, %v740
          %vm836 = vcmp.eq.s32.totalorder %v659, %v740
          %vm837 = vcmp.eq.s32.totalorder %v657, %v743
          %vm838 = vcmp.eq.s32.totalorder %v658, %v743
          %vm839 = vcmp.eq.s32.totalorder %v659, %v743
          %vm840 = vcmp.eq.s32.totalorder %v657, %v746
          %vm841 = vcmp.eq.s32.totalorder %v658, %v746
          %vm842 = vcmp.eq.s32.totalorder %v659, %v746
          %vm843 = vcmp.eq.s32.totalorder %v657, %v749
          %vm844 = vcmp.eq.s32.totalorder %v658, %v749
          %vm845 = vcmp.eq.s32.totalorder %v659, %v749
          %vm846 = vcmp.eq.s32.totalorder %v657, %v752
          %vm847 = vcmp.eq.s32.totalorder %v658, %v752
          %vm848 = vcmp.eq.s32.totalorder %v659, %v752
          %vm849 = vcmp.eq.s32.totalorder %v657, %v755
          %vm850 = vcmp.eq.s32.totalorder %v658, %v755
          %vm851 = vcmp.eq.s32.totalorder %v659, %v755
          %v852 = vsel %vm756, 1, 0
          %v853 = vsel %vm757, 1, 0
          %v854 = vsel %vm758, 1, 0
          %v855 = vsel %vm759, 1, 0
          %v856 = vsel %vm760, 1, 0
          %v857 = vsel %vm761, 1, 0
          %v858 = vsel %vm762, 1, 0
          %v859 = vsel %vm763, 1, 0
          %v860 = vsel %vm764, 1, 0
          %v861 = vsel %vm765, 1, 0
          %v862 = vsel %vm766, 1, 0
          %v863 = vsel %vm767, 1, 0
          %v864 = vsel %vm768, 1, 0
          %v865 = vsel %vm769, 1, 0
          %v866 = vsel %vm770, 1, 0
          %v867 = vsel %vm771, 1, 0
          %v868 = vsel %vm772, 1, 0
          %v869 = vsel %vm773, 1, 0
          %v870 = vsel %vm774, 1, 0
          %v871 = vsel %vm775, 1, 0
          %v872 = vsel %vm776, 1, 0
          %v873 = vsel %vm777, 1, 0
          %v874 = vsel %vm778, 1, 0
          %v875 = vsel %vm779, 1, 0
          %v876 = vsel %vm780, 1, 0
          %v877 = vsel %vm781, 1, 0
          %v878 = vsel %vm782, 1, 0
          %v879 = vsel %vm783, 1, 0
          %v880 = vsel %vm784, 1, 0
          %v881 = vsel %vm785, 1, 0
          %v882 = vsel %vm786, 1, 0
          %v883 = vsel %vm787, 1, 0
          %v884 = vsel %vm788, 1, 0
          %v885 = vsel %vm789, 1, 0
          %v886 = vsel %vm790, 1, 0
          %v887 = vsel %vm791, 1, 0
          %v888 = vsel %vm792, 1, 0
          %v889 = vsel %vm793, 1, 0
          %v890 = vsel %vm794, 1, 0
          %v891 = vsel %vm795, 1, 0
          %v892 = vsel %vm796, 1, 0
          %v893 = vsel %vm797, 1, 0
          %v894 = vsel %vm798, 1, 0
          %v895 = vsel %vm799, 1, 0
          %v896 = vsel %vm800, 1, 0
          %v897 = vsel %vm801, 1, 0
          %v898 = vsel %vm802, 1, 0
          %v899 = vsel %vm803, 1, 0
          %v900 = vsel %vm804, 1, 0
          %v901 = vsel %vm805, 1, 0
          %v902 = vsel %vm806, 1, 0
          %v903 = vsel %vm807, 1, 0
          %v904 = vsel %vm808, 1, 0
          %v905 = vsel %vm809, 1, 0
          %v906 = vsel %vm810, 1, 0
          %v907 = vsel %vm811, 1, 0
          %v908 = vsel %vm812, 1, 0
          %v909 = vsel %vm813, 1, 0
          %v910 = vsel %vm814, 1, 0
          %v911 = vsel %vm815, 1, 0
          %v912 = vsel %vm816, 1, 0
          %v913 = vsel %vm817, 1, 0
          %v914 = vsel %vm818, 1, 0
          %v915 = vsel %vm819, 1, 0
          %v916 = vsel %vm820, 1, 0
          %v917 = vsel %vm821, 1, 0
          %v918 = vsel %vm822, 1, 0
          %v919 = vsel %vm823, 1, 0
          %v920 = vsel %vm824, 1, 0
          %v921 = vsel %vm825, 1, 0
          %v922 = vsel %vm826, 1, 0
          %v923 = vsel %vm827, 1, 0
          %v924 = vsel %vm828, 1, 0
          %v925 = vsel %vm829, 1, 0
          %v926 = vsel %vm830, 1, 0
          %v927 = vsel %vm831, 1, 0
          %v928 = vsel %vm832, 1, 0
          %v929 = vsel %vm833, 1, 0
          %v930 = vsel %vm834, 1, 0
          %v931 = vsel %vm835, 1, 0
          %v932 = vsel %vm836, 1, 0
          %v933 = vsel %vm837, 1, 0
          %v934 = vsel %vm838, 1, 0
          %v935 = vsel %vm839, 1, 0
          %v936 = vsel %vm840, 1, 0
          %v937 = vsel %vm841, 1, 0
          %v938 = vsel %vm842, 1, 0
          %v939 = vsel %vm843, 1, 0
          %v940 = vsel %vm844, 1, 0
          %v941 = vsel %vm845, 1, 0
          %v942 = vsel %vm846, 1, 0
          %v943 = vsel %vm847, 1, 0
          %v944 = vsel %vm848, 1, 0
          %v945 = vsel %vm849, 1, 0
          %v946 = vsel %vm850, 1, 0
          %v947 = vsel %vm851, 1, 0
          %v948 = vcvt.s32.f32 %v852
          %v949 = vcvt.s32.f32 %v853
          %v950 = vcvt.s32.f32 %v854
          %v951 = vcvt.s32.f32 %v855
          %v952 = vcvt.s32.f32 %v856
          %v953 = vcvt.s32.f32 %v857
          %v954 = vcvt.s32.f32 %v858
          %v955 = vcvt.s32.f32 %v859
          %v956 = vcvt.s32.f32 %v860
          %v957 = vcvt.s32.f32 %v861
          %v958 = vcvt.s32.f32 %v862
          %v959 = vcvt.s32.f32 %v863
          %v960 = vcvt.s32.f32 %v864
          %v961 = vcvt.s32.f32 %v865
          %v962 = vcvt.s32.f32 %v866
          %v963 = vcvt.s32.f32 %v867
          %v964 = vcvt.s32.f32 %v868
          %v965 = vcvt.s32.f32 %v869
          %v966 = vcvt.s32.f32 %v870
          %v967 = vcvt.s32.f32 %v871
          %v968 = vcvt.s32.f32 %v872
          %v969 = vcvt.s32.f32 %v873
          %v970 = vcvt.s32.f32 %v874
          %v971 = vcvt.s32.f32 %v875
          %v972 = vcvt.s32.f32 %v876
          %v973 = vcvt.s32.f32 %v877
          %v974 = vcvt.s32.f32 %v878
          %v975 = vcvt.s32.f32 %v879
          %v976 = vcvt.s32.f32 %v880
          %v977 = vcvt.s32.f32 %v881
          %v978 = vcvt.s32.f32 %v882
          %v979 = vcvt.s32.f32 %v883
          %v980 = vcvt.s32.f32 %v884
          %v981 = vcvt.s32.f32 %v885
          %v982 = vcvt.s32.f32 %v886
          %v983 = vcvt.s32.f32 %v887
          %v984 = vcvt.s32.f32 %v888
          %v985 = vcvt.s32.f32 %v889
          %v986 = vcvt.s32.f32 %v890
          %v987 = vcvt.s32.f32 %v891
          %v988 = vcvt.s32.f32 %v892
          %v989 = vcvt.s32.f32 %v893
          %v990 = vcvt.s32.f32 %v894
          %v991 = vcvt.s32.f32 %v895
          %v992 = vcvt.s32.f32 %v896
          %v993 = vcvt.s32.f32 %v897
          %v994 = vcvt.s32.f32 %v898
          %v995 = vcvt.s32.f32 %v899
          %v996 = vcvt.s32.f32 %v900
          %v997 = vcvt.s32.f32 %v901
          %v998 = vcvt.s32.f32 %v902
          %v999 = vcvt.s32.f32 %v903
          %v1000 = vcvt.s32.f32 %v904
          %v1001 = vcvt.s32.f32 %v905
          %v1002 = vcvt.s32.f32 %v906
          %v1003 = vcvt.s32.f32 %v907
          %v1004 = vcvt.s32.f32 %v908
          %v1005 = vcvt.s32.f32 %v909
          %v1006 = vcvt.s32.f32 %v910
          %v1007 = vcvt.s32.f32 %v911
          %v1008 = vcvt.s32.f32 %v912
          %v1009 = vcvt.s32.f32 %v913
          %v1010 = vcvt.s32.f32 %v914
          %v1011 = vcvt.s32.f32 %v915
          %v1012 = vcvt.s32.f32 %v916
          %v1013 = vcvt.s32.f32 %v917
          %v1014 = vcvt.s32.f32 %v918
          %v1015 = vcvt.s32.f32 %v919
          %v1016 = vcvt.s32.f32 %v920
          %v1017 = vcvt.s32.f32 %v921
          %v1018 = vcvt.s32.f32 %v922
          %v1019 = vcvt.s32.f32 %v923
          %v1020 = vcvt.s32.f32 %v924
          %v1021 = vcvt.s32.f32 %v925
          %v1022 = vcvt.s32.f32 %v926
          %v1023 = vcvt.s32.f32 %v927
          %v1024 = vcvt.s32.f32 %v928
          %v1025 = vcvt.s32.f32 %v929
          %v1026 = vcvt.s32.f32 %v930
          %v1027 = vcvt.s32.f32 %v931
          %v1028 = vcvt.s32.f32 %v932
          %v1029 = vcvt.s32.f32 %v933
          %v1030 = vcvt.s32.f32 %v934
          %v1031 = vcvt.s32.f32 %v935
          %v1032 = vcvt.s32.f32 %v936
          %v1033 = vcvt.s32.f32 %v937
          %v1034 = vcvt.s32.f32 %v938
          %v1035 = vcvt.s32.f32 %v939
          %v1036 = vcvt.s32.f32 %v940
          %v1037 = vcvt.s32.f32 %v941
          %v1038 = vcvt.s32.f32 %v942
          %v1039 = vcvt.s32.f32 %v943
          %v1040 = vcvt.s32.f32 %v944
          %v1041 = vcvt.s32.f32 %v945
          %v1042 = vcvt.s32.f32 %v946
          %v1043 = vcvt.s32.f32 %v947
          %v1044 = vpack.c.bf16 %v951, %v948
          %v1045 = vpack.c.bf16 %v952, %v949
          %v1046 = vpack.c.bf16 %v953, %v950
          %v1047 = vpack.c.bf16 %v957, %v954
          %v1048 = vpack.c.bf16 %v958, %v955
          %v1049 = vpack.c.bf16 %v959, %v956
          %v1050 = vpack.c.bf16 %v963, %v960
          %v1051 = vpack.c.bf16 %v964, %v961
          %v1052 = vpack.c.bf16 %v965, %v962
          %v1053 = vpack.c.bf16 %v969, %v966
          %v1054 = vpack.c.bf16 %v970, %v967
          %v1055 = vpack.c.bf16 %v971, %v968
          %v1056 = vpack.c.bf16 %v975, %v972
          %v1057 = vpack.c.bf16 %v976, %v973
          %v1058 = vpack.c.bf16 %v977, %v974
          %v1059 = vpack.c.bf16 %v981, %v978
          %v1060 = vpack.c.bf16 %v982, %v979
          %v1061 = vpack.c.bf16 %v983, %v980
          %v1062 = vpack.c.bf16 %v987, %v984
          %v1063 = vpack.c.bf16 %v988, %v985
          %v1064 = vpack.c.bf16 %v989, %v986
          %v1065 = vpack.c.bf16 %v993, %v990
          %v1066 = vpack.c.bf16 %v994, %v991
          %v1067 = vpack.c.bf16 %v995, %v992
          %v1068 = vpack.c.bf16 %v999, %v996
          %v1069 = vpack.c.bf16 %v1000, %v997
          %v1070 = vpack.c.bf16 %v1001, %v998
          %v1071 = vpack.c.bf16 %v1005, %v1002
          %v1072 = vpack.c.bf16 %v1006, %v1003
          %v1073 = vpack.c.bf16 %v1007, %v1004
          %v1074 = vpack.c.bf16 %v1011, %v1008
          %v1075 = vpack.c.bf16 %v1012, %v1009
          %v1076 = vpack.c.bf16 %v1013, %v1010
          %v1077 = vpack.c.bf16 %v1017, %v1014
          %v1078 = vpack.c.bf16 %v1018, %v1015
          %v1079 = vpack.c.bf16 %v1019, %v1016
          %v1080 = vpack.c.bf16 %v1023, %v1020
          %v1081 = vpack.c.bf16 %v1024, %v1021
          %v1082 = vpack.c.bf16 %v1025, %v1022
          %v1083 = vpack.c.bf16 %v1029, %v1026
          %v1084 = vpack.c.bf16 %v1030, %v1027
          %v1085 = vpack.c.bf16 %v1031, %v1028
          %v1086 = vpack.c.bf16 %v1035, %v1032
          %v1087 = vpack.c.bf16 %v1036, %v1033
          %v1088 = vpack.c.bf16 %v1037, %v1034
          %v1089 = vpack.c.bf16 %v1041, %v1038
          %v1090 = vpack.c.bf16 %v1042, %v1039
          %v1091 = vpack.c.bf16 %v1043, %v1040
          %v1126 = vand.u32 %v590, 4294901760
          %v1127 = vand.u32 %v591, 4294901760
          %v1128 = vand.u32 %v592, 4294901760
          %v1129 = vand.u32 %v593, 4294901760
          %v1130 = vand.u32 %v594, 4294901760
          %v1131 = vand.u32 %v595, 4294901760
          %v1132 = vand.u32 %v596, 4294901760
          %v1133 = vand.u32 %v597, 4294901760
          %v1134 = vand.u32 %v598, 4294901760
          %v1135 = vand.u32 %v599, 4294901760
          %v1136 = vand.u32 %v600, 4294901760
          %v1137 = vand.u32 %v601, 4294901760
          %v1138 = vand.u32 %v602, 4294901760
          %v1139 = vand.u32 %v603, 4294901760
          %v1140 = vand.u32 %v604, 4294901760
          %v1141 = vand.u32 %v605, 4294901760
          %v1142 = vand.u32 %v606, 4294901760
          %v1143 = vand.u32 %v607, 4294901760
          %v1144 = vand.u32 %v608, 4294901760
          %v1145 = vand.u32 %v609, 4294901760
          %v1146 = vand.u32 %v610, 4294901760
          %v1147 = vand.u32 %v611, 4294901760
          %v1148 = vand.u32 %v612, 4294901760
          %v1149 = vand.u32 %v613, 4294901760
          %v1150 = vand.u32 %v614, 4294901760
          %v1151 = vand.u32 %v615, 4294901760
          %v1152 = vand.u32 %v616, 4294901760
          %v1153 = vand.u32 %v617, 4294901760
          %v1154 = vand.u32 %v618, 4294901760
          %v1155 = vand.u32 %v619, 4294901760
          %v1156 = vand.u32 %v620, 4294901760
          %v1157 = vand.u32 %v621, 4294901760
          %v1158 = vand.u32 %v622, 4294901760
          %v1159 = vand.u32 %v623, 4294901760
          %v1194 = vsub.f32 %v590, %v1126
          %v1195 = vsub.f32 %v591, %v1127
          %v1196 = vsub.f32 %v592, %v1128
          %v1197 = vsub.f32 %v593, %v1129
          %v1198 = vsub.f32 %v594, %v1130
          %v1199 = vsub.f32 %v595, %v1131
          %v1200 = vsub.f32 %v596, %v1132
          %v1201 = vsub.f32 %v597, %v1133
          %v1202 = vsub.f32 %v598, %v1134
          %v1203 = vsub.f32 %v599, %v1135
          %v1204 = vsub.f32 %v600, %v1136
          %v1205 = vsub.f32 %v601, %v1137
          %v1206 = vsub.f32 %v602, %v1138
          %v1207 = vsub.f32 %v603, %v1139
          %v1208 = vsub.f32 %v604, %v1140
          %v1209 = vsub.f32 %v605, %v1141
          %v1210 = vsub.f32 %v606, %v1142
          %v1211 = vsub.f32 %v607, %v1143
          %v1212 = vsub.f32 %v608, %v1144
          %v1213 = vsub.f32 %v609, %v1145
          %v1214 = vsub.f32 %v610, %v1146
          %v1215 = vsub.f32 %v611, %v1147
          %v1216 = vsub.f32 %v612, %v1148
          %v1217 = vsub.f32 %v613, %v1149
          %v1218 = vsub.f32 %v614, %v1150
          %v1219 = vsub.f32 %v615, %v1151
          %v1220 = vsub.f32 %v616, %v1152
          %v1221 = vsub.f32 %v617, %v1153
          %v1222 = vsub.f32 %v618, %v1154
          %v1223 = vsub.f32 %v619, %v1155
          %v1224 = vsub.f32 %v620, %v1156
          %v1225 = vsub.f32 %v621, %v1157
          %v1226 = vsub.f32 %v622, %v1158
          %v1227 = vsub.f32 %v623, %v1159
          %v1262 = vand.u32 %v1194, 4294901760
          %v1263 = vand.u32 %v1195, 4294901760
          %v1264 = vand.u32 %v1196, 4294901760
          %v1265 = vand.u32 %v1197, 4294901760
          %v1266 = vand.u32 %v1198, 4294901760
          %v1267 = vand.u32 %v1199, 4294901760
          %v1268 = vand.u32 %v1200, 4294901760
          %v1269 = vand.u32 %v1201, 4294901760
          %v1270 = vand.u32 %v1202, 4294901760
          %v1271 = vand.u32 %v1203, 4294901760
          %v1272 = vand.u32 %v1204, 4294901760
          %v1273 = vand.u32 %v1205, 4294901760
          %v1274 = vand.u32 %v1206, 4294901760
          %v1275 = vand.u32 %v1207, 4294901760
          %v1276 = vand.u32 %v1208, 4294901760
          %v1277 = vand.u32 %v1209, 4294901760
          %v1278 = vand.u32 %v1210, 4294901760
          %v1279 = vand.u32 %v1211, 4294901760
          %v1280 = vand.u32 %v1212, 4294901760
          %v1281 = vand.u32 %v1213, 4294901760
          %v1282 = vand.u32 %v1214, 4294901760
          %v1283 = vand.u32 %v1215, 4294901760
          %v1284 = vand.u32 %v1216, 4294901760
          %v1285 = vand.u32 %v1217, 4294901760
          %v1286 = vand.u32 %v1218, 4294901760
          %v1287 = vand.u32 %v1219, 4294901760
          %v1288 = vand.u32 %v1220, 4294901760
          %v1289 = vand.u32 %v1221, 4294901760
          %v1290 = vand.u32 %v1222, 4294901760
          %v1291 = vand.u32 %v1223, 4294901760
          %v1292 = vand.u32 %v1224, 4294901760
          %v1293 = vand.u32 %v1225, 4294901760
          %v1294 = vand.u32 %v1226, 4294901760
          %v1295 = vand.u32 %v1227, 4294901760
          %v1330 = vsub.f32 %v1194, %v1262
          %v1331 = vsub.f32 %v1195, %v1263
          %v1332 = vsub.f32 %v1196, %v1264
          %v1333 = vsub.f32 %v1197, %v1265
          %v1334 = vsub.f32 %v1198, %v1266
          %v1335 = vsub.f32 %v1199, %v1267
          %v1336 = vsub.f32 %v1200, %v1268
          %v1337 = vsub.f32 %v1201, %v1269
          %v1338 = vsub.f32 %v1202, %v1270
          %v1339 = vsub.f32 %v1203, %v1271
          %v1340 = vsub.f32 %v1204, %v1272
          %v1341 = vsub.f32 %v1205, %v1273
          %v1342 = vsub.f32 %v1206, %v1274
          %v1343 = vsub.f32 %v1207, %v1275
          %v1344 = vsub.f32 %v1208, %v1276
          %v1345 = vsub.f32 %v1209, %v1277
          %v1346 = vsub.f32 %v1210, %v1278
          %v1347 = vsub.f32 %v1211, %v1279
          %v1348 = vsub.f32 %v1212, %v1280
          %v1349 = vsub.f32 %v1213, %v1281
          %v1350 = vsub.f32 %v1214, %v1282
          %v1351 = vsub.f32 %v1215, %v1283
          %v1352 = vsub.f32 %v1216, %v1284
          %v1353 = vsub.f32 %v1217, %v1285
          %v1354 = vsub.f32 %v1218, %v1286
          %v1355 = vsub.f32 %v1219, %v1287
          %v1356 = vsub.f32 %v1220, %v1288
          %v1357 = vsub.f32 %v1221, %v1289
          %v1358 = vsub.f32 %v1222, %v1290
          %v1359 = vsub.f32 %v1223, %v1291
          %v1360 = vsub.f32 %v1224, %v1292
          %v1361 = vsub.f32 %v1225, %v1293
          %v1362 = vsub.f32 %v1226, %v1294
          %v1363 = vsub.f32 %v1227, %v1295
          %v1364 = vpack.c.bf16 %v1127, %v1126
          %v1365 = vpack.c.bf16 %v1129, %v1128
          %v1366 = vpack.c.bf16 %v1131, %v1130
          %v1367 = vpack.c.bf16 %v1133, %v1132
          %v1368 = vpack.c.bf16 %v1135, %v1134
          %v1369 = vpack.c.bf16 %v1137, %v1136
          %v1370 = vpack.c.bf16 %v1139, %v1138
          %v1371 = vpack.c.bf16 %v1141, %v1140
          %v1372 = vpack.c.bf16 %v1143, %v1142
          %v1373 = vpack.c.bf16 %v1145, %v1144
          %v1374 = vpack.c.bf16 %v1147, %v1146
          %v1375 = vpack.c.bf16 %v1149, %v1148
          %v1376 = vpack.c.bf16 %v1151, %v1150
          %v1377 = vpack.c.bf16 %v1153, %v1152
          %v1378 = vpack.c.bf16 %v1155, %v1154
          %v1379 = vpack.c.bf16 %v1157, %v1156
          %v1380 = vpack.c.bf16 %v1159, %v1158
          %v1381 = vpack.c.bf16 %v1263, %v1262
          %v1382 = vpack.c.bf16 %v1265, %v1264
          %v1383 = vpack.c.bf16 %v1267, %v1266
          %v1384 = vpack.c.bf16 %v1269, %v1268
          %v1385 = vpack.c.bf16 %v1271, %v1270
          %v1386 = vpack.c.bf16 %v1273, %v1272
          %v1387 = vpack.c.bf16 %v1275, %v1274
          %v1388 = vpack.c.bf16 %v1277, %v1276
          %v1389 = vpack.c.bf16 %v1279, %v1278
          %v1390 = vpack.c.bf16 %v1281, %v1280
          %v1391 = vpack.c.bf16 %v1283, %v1282
          %v1392 = vpack.c.bf16 %v1285, %v1284
          %v1393 = vpack.c.bf16 %v1287, %v1286
          %v1394 = vpack.c.bf16 %v1289, %v1288
          %v1395 = vpack.c.bf16 %v1291, %v1290
          %v1396 = vpack.c.bf16 %v1293, %v1292
          %v1397 = vpack.c.bf16 %v1295, %v1294
          %v1398 = vpack.c.bf16 %v1331, %v1330
          %v1399 = vpack.c.bf16 %v1333, %v1332
          %v1400 = vpack.c.bf16 %v1335, %v1334
          %v1401 = vpack.c.bf16 %v1337, %v1336
          %v1402 = vpack.c.bf16 %v1339, %v1338
          %v1403 = vpack.c.bf16 %v1341, %v1340
          %v1404 = vpack.c.bf16 %v1343, %v1342
          %v1405 = vpack.c.bf16 %v1345, %v1344
          %v1406 = vpack.c.bf16 %v1347, %v1346
          %v1407 = vpack.c.bf16 %v1349, %v1348
          %v1408 = vpack.c.bf16 %v1351, %v1350
          %v1409 = vpack.c.bf16 %v1353, %v1352
          %v1410 = vpack.c.bf16 %v1355, %v1354
          %v1411 = vpack.c.bf16 %v1357, %v1356
          %v1412 = vpack.c.bf16 %v1359, %v1358
          %v1413 = vpack.c.bf16 %v1361, %v1360
          %v1414 = vpack.c.bf16 %v1363, %v1362
          %vm1415 = vcmask 130048
          %v1417 = vsel %vm1415, %v1046, 0
          %v1420 = vsel %vm1415, %v1049, 0
          %v1423 = vsel %vm1415, %v1052, 0
          %v1426 = vsel %vm1415, %v1055, 0
          %v1429 = vsel %vm1415, %v1058, 0
          %v1432 = vsel %vm1415, %v1061, 0
          %v1435 = vsel %vm1415, %v1064, 0
          %v1438 = vsel %vm1415, %v1067, 0
          %v1441 = vsel %vm1415, %v1070, 0
          %v1444 = vsel %vm1415, %v1073, 0
          %v1447 = vsel %vm1415, %v1076, 0
          %v1450 = vsel %vm1415, %v1079, 0
          %v1453 = vsel %vm1415, %v1082, 0
          %v1456 = vsel %vm1415, %v1085, 0
          %v1459 = vsel %vm1415, %v1088, 0
          %v1462 = vsel %vm1415, %v1091, 0
          %1464 = vmatprep.subr.bf16.mxu0 0
          %1465 = vmatpush1.bf16.msra.mxu0 %v1381
          %1466 = vmatprep.subr.bf16.mxu0 0
          %1467 = vmatpush1.bf16.msra.mxu0 %v1382
          %1468 = vmatprep.subr.bf16.mxu0 0
          %1469 = vmatpush1.bf16.msra.mxu0 %v1383
          %1470 = vmatprep.subr.bf16.mxu0 0
          %1471 = vmatpush1.bf16.msra.mxu0 %v1384
          %1472 = vmatprep.subr.bf16.mxu0 0
          %1473 = vmatpush1.bf16.msra.mxu0 %v1385
          %1474 = vmatprep.subr.bf16.mxu0 0
          %1475 = vmatpush1.bf16.msra.mxu0 %v1386
          %1476 = vmatprep.subr.bf16.mxu0 0
          %1477 = vmatpush1.bf16.msra.mxu0 %v1387
          %1478 = vmatprep.subr.bf16.mxu0 0
          %1479 = vmatpush1.bf16.msra.mxu0 %v1388
          %1480 = vmatprep.subr.bf16.mxu0 0
          %1481 = vmatpush1.bf16.msra.mxu0 %v1389
          %1482 = vmatprep.subr.bf16.mxu0 0
          %1483 = vmatpush1.bf16.msra.mxu0 %v1390
          %1484 = vmatprep.subr.bf16.mxu0 0
          %1485 = vmatpush1.bf16.msra.mxu0 %v1391
          %1486 = vmatprep.subr.bf16.mxu0 0
          %1487 = vmatpush1.bf16.msra.mxu0 %v1392
          %1488 = vmatprep.subr.bf16.mxu0 0
          %1489 = vmatpush1.bf16.msra.mxu0 %v1393
          %1490 = vmatprep.subr.bf16.mxu0 0
          %1491 = vmatpush1.bf16.msra.mxu0 %v1394
          %1492 = vmatprep.subr.bf16.mxu0 0
          %1493 = vmatpush1.bf16.msra.mxu0 %v1395
          %1494 = vmatprep.subr.bf16.mxu0 0
          %1495 = vmatpush1.bf16.msra.mxu0 %v1396
          %1496 = vmatprep.mubr.bf16.mxu0 %v1045
          %1497 = vmatmul.mubr.bf16.gmra.mrb[0].mxu0 %v1044
          %v1498 = vpop.f32.mrb[0].mxu0
          %v1499 = vadd.f32 0.0, %v1498
          %v1500 = vpop.f32.mrb[0].mxu0
          %v1501 = vpop.f32.mrb[0].mxu0
          %v1502 = vadd.f32 0.0, %v1501
          %v1503 = vpop.f32.mrb[0].mxu0
          %1504 = vmatprep.mubr.bf16.mxu0 %v1048
          %1505 = vmatmul.mubr.bf16.gmra.mrb[0].mxu0 %v1047
          %v1506 = vpop.f32.mrb[0].mxu0
          %v1507 = vadd.f32 0.0, %v1506
          %v1508 = vpop.f32.mrb[0].mxu0
          %v1509 = vpop.f32.mrb[0].mxu0
          %v1510 = vadd.f32 0.0, %v1509
          %v1511 = vpop.f32.mrb[0].mxu0
          %1512 = vmatprep.mubr.bf16.mxu0 %v1051
          %1513 = vmatmul.mubr.bf16.gmra.mrb[0].mxu0 %v1050
          %v1514 = vpop.f32.mrb[0].mxu0
          %v1515 = vadd.f32 0.0, %v1514
          %v1516 = vpop.f32.mrb[0].mxu0
          %v1517 = vpop.f32.mrb[0].mxu0
          %v1518 = vadd.f32 0.0, %v1517
          %v1519 = vpop.f32.mrb[0].mxu0
          %1520 = vmatprep.mubr.bf16.mxu0 %v1054
          %1521 = vmatmul.mubr.bf16.gmra.mrb[0].mxu0 %v1053
          %v1522 = vpop.f32.mrb[0].mxu0
          %v1523 = vadd.f32 0.0, %v1522
          %v1524 = vpop.f32.mrb[0].mxu0
          %v1525 = vpop.f32.mrb[0].mxu0
          %v1526 = vadd.f32 0.0, %v1525
          %v1527 = vpop.f32.mrb[0].mxu0
          %1528 = vmatprep.mubr.bf16.mxu0 %v1057
          %1529 = vmatmul.mubr.bf16.gmra.mrb[0].mxu0 %v1056
          %v1530 = vpop.f32.mrb[0].mxu0
          %v1531 = vadd.f32 0.0, %v1530
          %v1532 = vpop.f32.mrb[0].mxu0
          %v1533 = vpop.f32.mrb[0].mxu0
          %v1534 = vadd.f32 0.0, %v1533
          %v1535 = vpop.f32.mrb[0].mxu0
          %1536 = vmatprep.mubr.bf16.mxu0 %v1060
          %1537 = vmatmul.mubr.bf16.gmra.mrb[0].mxu0 %v1059
          %v1538 = vpop.f32.mrb[0].mxu0
          %v1539 = vadd.f32 0.0, %v1538
          %v1540 = vpop.f32.mrb[0].mxu0
          %v1541 = vpop.f32.mrb[0].mxu0
          %v1542 = vadd.f32 0.0, %v1541
          %v1543 = vpop.f32.mrb[0].mxu0
          %1544 = vmatprep.mubr.bf16.mxu0 %v1063
          %1545 = vmatmul.mubr.bf16.gmra.mrb[0].mxu0 %v1062
          %v1546 = vpop.f32.mrb[0].mxu0
          %v1547 = vadd.f32 0.0, %v1546
          %v1548 = vpop.f32.mrb[0].mxu0
          %v1549 = vpop.f32.mrb[0].mxu0
          %v1550 = vadd.f32 0.0, %v1549
          %v1551 = vpop.f32.mrb[0].mxu0
          %1552 = vmatprep.mubr.bf16.mxu0 %v1066
          %1553 = vmatmul.mubr.bf16.gmra.mrb[0].mxu0 %v1065
          %v1554 = vpop.f32.mrb[0].mxu0
          %v1555 = vadd.f32 0.0, %v1554
          %v1556 = vpop.f32.mrb[0].mxu0
          %v1557 = vpop.f32.mrb[0].mxu0
          %v1558 = vadd.f32 0.0, %v1557
          %v1559 = vpop.f32.mrb[0].mxu0
          %1560 = vmatprep.mubr.bf16.mxu0 %v1069
          %1561 = vmatmul.mubr.bf16.gmra.mrb[0].mxu0 %v1068
          %v1562 = vpop.f32.mrb[0].mxu0
          %v1563 = vadd.f32 0.0, %v1562
          %v1564 = vpop.f32.mrb[0].mxu0
          %v1565 = vpop.f32.mrb[0].mxu0
          %v1566 = vadd.f32 0.0, %v1565
          %v1567 = vpop.f32.mrb[0].mxu0
          %1568 = vmatprep.mubr.bf16.mxu0 %v1072
          %1569 = vmatmul.mubr.bf16.gmra.mrb[0].mxu0 %v1071
          %v1570 = vpop.f32.mrb[0].mxu0
          %v1571 = vadd.f32 0.0, %v1570
          %v1572 = vpop.f32.mrb[0].mxu0
          %v1573 = vpop.f32.mrb[0].mxu0
          %v1574 = vadd.f32 0.0, %v1573
          %v1575 = vpop.f32.mrb[0].mxu0
          %1576 = vmatprep.mubr.bf16.mxu0 %v1075
          %1577 = vmatmul.mubr.bf16.gmra.mrb[0].mxu0 %v1074
          %v1578 = vpop.f32.mrb[0].mxu0
          %v1579 = vadd.f32 0.0, %v1578
          %v1580 = vpop.f32.mrb[0].mxu0
          %v1581 = vpop.f32.mrb[0].mxu0
          %v1582 = vadd.f32 0.0, %v1581
          %v1583 = vpop.f32.mrb[0].mxu0
          %1584 = vmatprep.mubr.bf16.mxu0 %v1078
          %1585 = vmatmul.mubr.bf16.gmra.mrb[0].mxu0 %v1077
          %v1586 = vpop.f32.mrb[0].mxu0
          %v1587 = vadd.f32 0.0, %v1586
          %v1588 = vpop.f32.mrb[0].mxu0
          %v1589 = vpop.f32.mrb[0].mxu0
          %v1590 = vadd.f32 0.0, %v1589
          %v1591 = vpop.f32.mrb[0].mxu0
          %1592 = vmatprep.mubr.bf16.mxu0 %v1081
          %1593 = vmatmul.mubr.bf16.gmra.mrb[0].mxu0 %v1080
          %v1594 = vpop.f32.mrb[0].mxu0
          %v1595 = vadd.f32 0.0, %v1594
          %v1596 = vpop.f32.mrb[0].mxu0
          %v1597 = vpop.f32.mrb[0].mxu0
          %v1598 = vadd.f32 0.0, %v1597
          %v1599 = vpop.f32.mrb[0].mxu0
          %1600 = vmatprep.mubr.bf16.mxu0 %v1084
          %1601 = vmatmul.mubr.bf16.gmra.mrb[0].mxu0 %v1083
          %v1602 = vpop.f32.mrb[0].mxu0
          %v1603 = vadd.f32 0.0, %v1602
          %v1604 = vpop.f32.mrb[0].mxu0
          %v1605 = vpop.f32.mrb[0].mxu0
          %v1606 = vadd.f32 0.0, %v1605
          %v1607 = vpop.f32.mrb[0].mxu0
          %1608 = vmatprep.mubr.bf16.mxu0 %v1087
          %1609 = vmatmul.mubr.bf16.gmra.mrb[0].mxu0 %v1086
          %v1610 = vpop.f32.mrb[0].mxu0
          %v1611 = vadd.f32 0.0, %v1610
          %v1612 = vpop.f32.mrb[0].mxu0
          %v1613 = vpop.f32.mrb[0].mxu0
          %v1614 = vadd.f32 0.0, %v1613
          %v1615 = vpop.f32.mrb[0].mxu0
          %1616 = vmatprep.mubr.bf16.mxu0 %v1090
          %1617 = vmatmul.mubr.bf16.gmra.mrb[0].mxu0 %v1089
          %v1618 = vpop.f32.mrb[0].mxu0
          %v1619 = vadd.f32 0.0, %v1618
          %v1620 = vpop.f32.mrb[0].mxu0
          %v1621 = vpop.f32.mrb[0].mxu0
          %v1622 = vadd.f32 0.0, %v1621
          %v1623 = vpop.f32.mrb[0].mxu0
          %1624 = vdwg.mxu0
          %1625 = vmatprep.subr.bf16.mxu0 0
          %1626 = vmatpush1.bf16.msra.mxu0 %v1397
          %1627 = vmatprep.subr.bf16.mxu0 0
          %1628 = vmatpush1.bf16.msra.mxu0 0
          %1629 = vmatprep.subr.bf16.mxu0 0
          %1630 = vmatpush1.bf16.msra.mxu0 0
          %1631 = vmatprep.subr.bf16.mxu0 0
          %1632 = vmatpush1.bf16.msra.mxu0 0
          %1633 = vmatprep.subr.bf16.mxu0 0
          %1634 = vmatpush1.bf16.msra.mxu0 0
          %1635 = vmatprep.subr.bf16.mxu0 0
          %1636 = vmatpush1.bf16.msra.mxu0 0
          %1637 = vmatprep.subr.bf16.mxu0 0
          %1638 = vmatpush1.bf16.msra.mxu0 0
          %1639 = vmatprep.subr.bf16.mxu0 0
          %1640 = vmatpush1.bf16.msra.mxu0 0
          %1641 = vmatprep.subr.bf16.mxu0 0
          %1642 = vmatpush1.bf16.msra.mxu0 0
          %1643 = vmatprep.subr.bf16.mxu0 0
          %1644 = vmatpush1.bf16.msra.mxu0 0
          %1645 = vmatprep.subr.bf16.mxu0 0
          %1646 = vmatpush1.bf16.msra.mxu0 0
          %1647 = vmatprep.subr.bf16.mxu0 0
          %1648 = vmatpush1.bf16.msra.mxu0 0
          %1649 = vmatprep.subr.bf16.mxu0 0
          %1650 = vmatpush1.bf16.msra.mxu0 0
          %1651 = vmatprep.subr.bf16.mxu0 0
          %1652 = vmatpush1.bf16.msra.mxu0 0
          %1653 = vmatprep.subr.bf16.mxu0 0
          %1654 = vmatpush1.bf16.msra.mxu0 0
          %1655 = vmatprep.subr.bf16.mxu0 0
          %1656 = vmatpush1.bf16.msra.mxu0 0
          %1657 = vmatprep.mubr.bf16.mxu0 0
          %1658 = vmatmul.mubr.bf16.gmra.mrb[0].mxu0 %v1417
          %v1659 = vpop.f32.mrb[0].mxu0
          %v1660 = vadd.f32 %v1499, %v1659
          %v1661 = vpop.f32.mrb[0].mxu0
          %v1662 = vpop.f32.mrb[0].mxu0
          %v1663 = vadd.f32 %v1502, %v1662
          %v1664 = vpop.f32.mrb[0].mxu0
          %1665 = vmatprep.mubr.bf16.mxu0 0
          %1666 = vmatmul.mubr.bf16.gmra.mrb[0].mxu0 %v1420
          %v1667 = vpop.f32.mrb[0].mxu0
          %v1668 = vadd.f32 %v1507, %v1667
          %v1669 = vpop.f32.mrb[0].mxu0
          %v1670 = vpop.f32.mrb[0].mxu0
          %v1671 = vadd.f32 %v1510, %v1670
          %v1672 = vpop.f32.mrb[0].mxu0
          %1673 = vmatprep.mubr.bf16.mxu0 0
          %1674 = vmatmul.mubr.bf16.gmra.mrb[0].mxu0 %v1423
          %v1675 = vpop.f32.mrb[0].mxu0
          %v1676 = vadd.f32 %v1515, %v1675
          %v1677 = vpop.f32.mrb[0].mxu0
          %v1678 = vpop.f32.mrb[0].mxu0
          %v1679 = vadd.f32 %v1518, %v1678
          %v1680 = vpop.f32.mrb[0].mxu0
          %1681 = vmatprep.mubr.bf16.mxu0 0
          %1682 = vmatmul.mubr.bf16.gmra.mrb[0].mxu0 %v1426
          %v1683 = vpop.f32.mrb[0].mxu0
          %v1684 = vadd.f32 %v1523, %v1683
          %v1685 = vpop.f32.mrb[0].mxu0
          %v1686 = vpop.f32.mrb[0].mxu0
          %v1687 = vadd.f32 %v1526, %v1686
          %v1688 = vpop.f32.mrb[0].mxu0
          %1689 = vmatprep.mubr.bf16.mxu0 0
          %1690 = vmatmul.mubr.bf16.gmra.mrb[0].mxu0 %v1429
          %v1691 = vpop.f32.mrb[0].mxu0
          %v1692 = vadd.f32 %v1531, %v1691
          %v1693 = vpop.f32.mrb[0].mxu0
          %v1694 = vpop.f32.mrb[0].mxu0
          %v1695 = vadd.f32 %v1534, %v1694
          %v1696 = vpop.f32.mrb[0].mxu0
          %1697 = vmatprep.mubr.bf16.mxu0 0
          %1698 = vmatmul.mubr.bf16.gmra.mrb[0].mxu0 %v1432
          %v1699 = vpop.f32.mrb[0].mxu0
          %v1700 = vadd.f32 %v1539, %v1699
          %v1701 = vpop.f32.mrb[0].mxu0
          %v1702 = vpop.f32.mrb[0].mxu0
          %v1703 = vadd.f32 %v1542, %v1702
          %v1704 = vpop.f32.mrb[0].mxu0
          %1705 = vmatprep.mubr.bf16.mxu0 0
          %1706 = vmatmul.mubr.bf16.gmra.mrb[0].mxu0 %v1435
          %v1707 = vpop.f32.mrb[0].mxu0
          %v1708 = vadd.f32 %v1547, %v1707
          %v1709 = vpop.f32.mrb[0].mxu0
          %v1710 = vpop.f32.mrb[0].mxu0
          %v1711 = vadd.f32 %v1550, %v1710
          %v1712 = vpop.f32.mrb[0].mxu0
          %1713 = vmatprep.mubr.bf16.mxu0 0
          %1714 = vmatmul.mubr.bf16.gmra.mrb[0].mxu0 %v1438
          %v1715 = vpop.f32.mrb[0].mxu0
          %v1716 = vadd.f32 %v1555, %v1715
          %v1717 = vpop.f32.mrb[0].mxu0
          %v1718 = vpop.f32.mrb[0].mxu0
          %v1719 = vadd.f32 %v1558, %v1718
          %v1720 = vpop.f32.mrb[0].mxu0
          %1721 = vmatprep.mubr.bf16.mxu0 0
          %1722 = vmatmul.mubr.bf16.gmra.mrb[0].mxu0 %v1441
          %v1723 = vpop.f32.mrb[0].mxu0
          %v1724 = vadd.f32 %v1563, %v1723
          %v1725 = vpop.f32.mrb[0].mxu0
          %v1726 = vpop.f32.mrb[0].mxu0
          %v1727 = vadd.f32 %v1566, %v1726
          %v1728 = vpop.f32.mrb[0].mxu0
          %1729 = vmatprep.mubr.bf16.mxu0 0
          %1730 = vmatmul.mubr.bf16.gmra.mrb[0].mxu0 %v1444
          %v1731 = vpop.f32.mrb[0].mxu0
          %v1732 = vadd.f32 %v1571, %v1731
          %v1733 = vpop.f32.mrb[0].mxu0
          %v1734 = vpop.f32.mrb[0].mxu0
          %v1735 = vadd.f32 %v1574, %v1734
          %v1736 = vpop.f32.mrb[0].mxu0
          %1737 = vmatprep.mubr.bf16.mxu0 0
          %1738 = vmatmul.mubr.bf16.gmra.mrb[0].mxu0 %v1447
          %v1739 = vpop.f32.mrb[0].mxu0
          %v1740 = vadd.f32 %v1579, %v1739
          %v1741 = vpop.f32.mrb[0].mxu0
          %v1742 = vpop.f32.mrb[0].mxu0
          %v1743 = vadd.f32 %v1582, %v1742
          %v1744 = vpop.f32.mrb[0].mxu0
          %1745 = vmatprep.mubr.bf16.mxu0 0
          %1746 = vmatmul.mubr.bf16.gmra.mrb[0].mxu0 %v1450
          %v1747 = vpop.f32.mrb[0].mxu0
          %v1748 = vadd.f32 %v1587, %v1747
          %v1749 = vpop.f32.mrb[0].mxu0
          %v1750 = vpop.f32.mrb[0].mxu0
          %v1751 = vadd.f32 %v1590, %v1750
          %v1752 = vpop.f32.mrb[0].mxu0
          %1753 = vmatprep.mubr.bf16.mxu0 0
          %1754 = vmatmul.mubr.bf16.gmra.mrb[0].mxu0 %v1453
          %v1755 = vpop.f32.mrb[0].mxu0
          %v1756 = vadd.f32 %v1595, %v1755
          %v1757 = vpop.f32.mrb[0].mxu0
          %v1758 = vpop.f32.mrb[0].mxu0
          %v1759 = vadd.f32 %v1598, %v1758
          %v1760 = vpop.f32.mrb[0].mxu0
          %1761 = vmatprep.mubr.bf16.mxu0 0
          %1762 = vmatmul.mubr.bf16.gmra.mrb[0].mxu0 %v1456
          %v1763 = vpop.f32.mrb[0].mxu0
          %v1764 = vadd.f32 %v1603, %v1763
          %v1765 = vpop.f32.mrb[0].mxu0
          %v1766 = vpop.f32.mrb[0].mxu0
          %v1767 = vadd.f32 %v1606, %v1766
          %v1768 = vpop.f32.mrb[0].mxu0
          %1769 = vmatprep.mubr.bf16.mxu0 0
          %1770 = vmatmul.mubr.bf16.gmra.mrb[0].mxu0 %v1459
          %v1771 = vpop.f32.mrb[0].mxu0
          %v1772 = vadd.f32 %v1611, %v1771
          %v1773 = vpop.f32.mrb[0].mxu0
          %v1774 = vpop.f32.mrb[0].mxu0
          %v1775 = vadd.f32 %v1614, %v1774
          %v1776 = vpop.f32.mrb[0].mxu0
          %1777 = vmatprep.mubr.bf16.mxu0 0
          %1778 = vmatmul.mubr.bf16.gmra.mrb[0].mxu0 %v1462
          %v1779 = vpop.f32.mrb[0].mxu0
          %v1780 = vadd.f32 %v1619, %v1779
          %v1781 = vpop.f32.mrb[0].mxu0
          %v1782 = vpop.f32.mrb[0].mxu0
          %v1783 = vadd.f32 %v1622, %v1782
          %v1784 = vpop.f32.mrb[0].mxu0
          %1785 = vdwg.mxu0
          %1786 = vmatprep.subr.bf16.mxu0 0
          %1787 = vmatpush1.bf16.msra.mxu0 %v1364
          %1788 = vmatprep.subr.bf16.mxu0 0
          %1789 = vmatpush1.bf16.msra.mxu0 %v1365
          %1790 = vmatprep.subr.bf16.mxu0 0
          %1791 = vmatpush1.bf16.msra.mxu0 %v1366
          %1792 = vmatprep.subr.bf16.mxu0 0
          %1793 = vmatpush1.bf16.msra.mxu0 %v1367
          %1794 = vmatprep.subr.bf16.mxu0 0
          %1795 = vmatpush1.bf16.msra.mxu0 %v1368
          %1796 = vmatprep.subr.bf16.mxu0 0
          %1797 = vmatpush1.bf16.msra.mxu0 %v1369
          %1798 = vmatprep.subr.bf16.mxu0 0
          %1799 = vmatpush1.bf16.msra.mxu0 %v1370
          %1800 = vmatprep.subr.bf16.mxu0 0
          %1801 = vmatpush1.bf16.msra.mxu0 %v1371
          %1802 = vmatprep.subr.bf16.mxu0 0
          %1803 = vmatpush1.bf16.msra.mxu0 %v1372
          %1804 = vmatprep.subr.bf16.mxu0 0
          %1805 = vmatpush1.bf16.msra.mxu0 %v1373
          %1806 = vmatprep.subr.bf16.mxu0 0
          %1807 = vmatpush1.bf16.msra.mxu0 %v1374
          %1808 = vmatprep.subr.bf16.mxu0 0
          %1809 = vmatpush1.bf16.msra.mxu0 %v1375
          %1810 = vmatprep.subr.bf16.mxu0 0
          %1811 = vmatpush1.bf16.msra.mxu0 %v1376
          %1812 = vmatprep.subr.bf16.mxu0 0
          %1813 = vmatpush1.bf16.msra.mxu0 %v1377
          %1814 = vmatprep.subr.bf16.mxu0 0
          %1815 = vmatpush1.bf16.msra.mxu0 %v1378
          %1816 = vmatprep.subr.bf16.mxu0 0
          %1817 = vmatpush1.bf16.msra.mxu0 %v1379
          %1818 = vmatprep.mubr.bf16.mxu0 %v1045
          %1819 = vmatmul.mubr.bf16.gmra.mrb[0].mxu0 %v1044
          %v1820 = vpop.f32.mrb[0].mxu0
          %v1821 = vadd.f32 %v1660, %v1820
          %v1822 = vpop.f32.mrb[0].mxu0
          %v1823 = vpop.f32.mrb[0].mxu0
          %v1824 = vadd.f32 %v1663, %v1823
          %v1825 = vpop.f32.mrb[0].mxu0
          %1826 = vmatprep.mubr.bf16.mxu0 %v1048
          %1827 = vmatmul.mubr.bf16.gmra.mrb[0].mxu0 %v1047
          %v1828 = vpop.f32.mrb[0].mxu0
          %v1829 = vadd.f32 %v1668, %v1828
          %v1830 = vpop.f32.mrb[0].mxu0
          %v1831 = vpop.f32.mrb[0].mxu0
          %v1832 = vadd.f32 %v1671, %v1831
          %v1833 = vpop.f32.mrb[0].mxu0
          %1834 = vmatprep.mubr.bf16.mxu0 %v1051
          %1835 = vmatmul.mubr.bf16.gmra.mrb[0].mxu0 %v1050
          %v1836 = vpop.f32.mrb[0].mxu0
          %v1837 = vadd.f32 %v1676, %v1836
          %v1838 = vpop.f32.mrb[0].mxu0
          %v1839 = vpop.f32.mrb[0].mxu0
          %v1840 = vadd.f32 %v1679, %v1839
          %v1841 = vpop.f32.mrb[0].mxu0
          %1842 = vmatprep.mubr.bf16.mxu0 %v1054
          %1843 = vmatmul.mubr.bf16.gmra.mrb[0].mxu0 %v1053
          %v1844 = vpop.f32.mrb[0].mxu0
          %v1845 = vadd.f32 %v1684, %v1844
          %v1846 = vpop.f32.mrb[0].mxu0
          %v1847 = vpop.f32.mrb[0].mxu0
          %v1848 = vadd.f32 %v1687, %v1847
          %v1849 = vpop.f32.mrb[0].mxu0
          %1850 = vmatprep.mubr.bf16.mxu0 %v1057
          %1851 = vmatmul.mubr.bf16.gmra.mrb[0].mxu0 %v1056
          %v1852 = vpop.f32.mrb[0].mxu0
          %v1853 = vadd.f32 %v1692, %v1852
          %v1854 = vpop.f32.mrb[0].mxu0
          %v1855 = vpop.f32.mrb[0].mxu0
          %v1856 = vadd.f32 %v1695, %v1855
          %v1857 = vpop.f32.mrb[0].mxu0
          %1858 = vmatprep.mubr.bf16.mxu0 %v1060
          %1859 = vmatmul.mubr.bf16.gmra.mrb[0].mxu0 %v1059
          %v1860 = vpop.f32.mrb[0].mxu0
          %v1861 = vadd.f32 %v1700, %v1860
          %v1862 = vpop.f32.mrb[0].mxu0
          %v1863 = vpop.f32.mrb[0].mxu0
          %v1864 = vadd.f32 %v1703, %v1863
          %v1865 = vpop.f32.mrb[0].mxu0
          %1866 = vmatprep.mubr.bf16.mxu0 %v1063
          %1867 = vmatmul.mubr.bf16.gmra.mrb[0].mxu0 %v1062
          %v1868 = vpop.f32.mrb[0].mxu0
          %v1869 = vadd.f32 %v1708, %v1868
          %v1870 = vpop.f32.mrb[0].mxu0
          %v1871 = vpop.f32.mrb[0].mxu0
          %v1872 = vadd.f32 %v1711, %v1871
          %v1873 = vpop.f32.mrb[0].mxu0
          %1874 = vmatprep.mubr.bf16.mxu0 %v1066
          %1875 = vmatmul.mubr.bf16.gmra.mrb[0].mxu0 %v1065
          %v1876 = vpop.f32.mrb[0].mxu0
          %v1877 = vadd.f32 %v1716, %v1876
          %v1878 = vpop.f32.mrb[0].mxu0
          %v1879 = vpop.f32.mrb[0].mxu0
          %v1880 = vadd.f32 %v1719, %v1879
          %v1881 = vpop.f32.mrb[0].mxu0
          %1882 = vmatprep.mubr.bf16.mxu0 %v1069
          %1883 = vmatmul.mubr.bf16.gmra.mrb[0].mxu0 %v1068
          %v1884 = vpop.f32.mrb[0].mxu0
          %v1885 = vadd.f32 %v1724, %v1884
          %v1886 = vpop.f32.mrb[0].mxu0
          %v1887 = vpop.f32.mrb[0].mxu0
          %v1888 = vadd.f32 %v1727, %v1887
          %v1889 = vpop.f32.mrb[0].mxu0
          %1890 = vmatprep.mubr.bf16.mxu0 %v1072
          %1891 = vmatmul.mubr.bf16.gmra.mrb[0].mxu0 %v1071
          %v1892 = vpop.f32.mrb[0].mxu0
          %v1893 = vadd.f32 %v1732, %v1892
          %v1894 = vpop.f32.mrb[0].mxu0
          %v1895 = vpop.f32.mrb[0].mxu0
          %v1896 = vadd.f32 %v1735, %v1895
          %v1897 = vpop.f32.mrb[0].mxu0
          %1898 = vmatprep.mubr.bf16.mxu0 %v1075
          %1899 = vmatmul.mubr.bf16.gmra.mrb[0].mxu0 %v1074
          %v1900 = vpop.f32.mrb[0].mxu0
          %v1901 = vadd.f32 %v1740, %v1900
          %v1902 = vpop.f32.mrb[0].mxu0
          %v1903 = vpop.f32.mrb[0].mxu0
          %v1904 = vadd.f32 %v1743, %v1903
          %v1905 = vpop.f32.mrb[0].mxu0
          %1906 = vmatprep.mubr.bf16.mxu0 %v1078
          %1907 = vmatmul.mubr.bf16.gmra.mrb[0].mxu0 %v1077
          %v1908 = vpop.f32.mrb[0].mxu0
          %v1909 = vadd.f32 %v1748, %v1908
          %v1910 = vpop.f32.mrb[0].mxu0
          %v1911 = vpop.f32.mrb[0].mxu0
          %v1912 = vadd.f32 %v1751, %v1911
          %v1913 = vpop.f32.mrb[0].mxu0
          %1914 = vmatprep.mubr.bf16.mxu0 %v1081
          %1915 = vmatmul.mubr.bf16.gmra.mrb[0].mxu0 %v1080
          %v1916 = vpop.f32.mrb[0].mxu0
          %v1917 = vadd.f32 %v1756, %v1916
          %v1918 = vpop.f32.mrb[0].mxu0
          %v1919 = vpop.f32.mrb[0].mxu0
          %v1920 = vadd.f32 %v1759, %v1919
          %v1921 = vpop.f32.mrb[0].mxu0
          %1922 = vmatprep.mubr.bf16.mxu0 %v1084
          %1923 = vmatmul.mubr.bf16.gmra.mrb[0].mxu0 %v1083
          %v1924 = vpop.f32.mrb[0].mxu0
          %v1925 = vadd.f32 %v1764, %v1924
          %v1926 = vpop.f32.mrb[0].mxu0
          %v1927 = vpop.f32.mrb[0].mxu0
          %v1928 = vadd.f32 %v1767, %v1927
          %v1929 = vpop.f32.mrb[0].mxu0
          %1930 = vmatprep.mubr.bf16.mxu0 %v1087
          %1931 = vmatmul.mubr.bf16.gmra.mrb[0].mxu0 %v1086
          %v1932 = vpop.f32.mrb[0].mxu0
          %v1933 = vadd.f32 %v1772, %v1932
          %v1934 = vpop.f32.mrb[0].mxu0
          %v1935 = vpop.f32.mrb[0].mxu0
          %v1936 = vadd.f32 %v1775, %v1935
          %v1937 = vpop.f32.mrb[0].mxu0
          %1938 = vmatprep.mubr.bf16.mxu0 %v1090
          %1939 = vmatmul.mubr.bf16.gmra.mrb[0].mxu0 %v1089
          %v1940 = vpop.f32.mrb[0].mxu0
          %v1941 = vadd.f32 %v1780, %v1940
          %v1942 = vpop.f32.mrb[0].mxu0
          %v1943 = vpop.f32.mrb[0].mxu0
          %v1944 = vadd.f32 %v1783, %v1943
          %v1945 = vpop.f32.mrb[0].mxu0
          %1946 = vdwg.mxu0
          %1947 = vmatprep.subr.bf16.mxu0 0
          %1948 = vmatpush1.bf16.msra.mxu0 %v1380
          %1949 = vmatprep.subr.bf16.mxu0 0
          %1950 = vmatpush1.bf16.msra.mxu0 0
          %1951 = vmatprep.subr.bf16.mxu0 0
          %1952 = vmatpush1.bf16.msra.mxu0 0
          %1953 = vmatprep.subr.bf16.mxu0 0
          %1954 = vmatpush1.bf16.msra.mxu0 0
          %1955 = vmatprep.subr.bf16.mxu0 0
          %1956 = vmatpush1.bf16.msra.mxu0 0
          %1957 = vmatprep.subr.bf16.mxu0 0
          %1958 = vmatpush1.bf16.msra.mxu0 0
          %1959 = vmatprep.subr.bf16.mxu0 0
          %1960 = vmatpush1.bf16.msra.mxu0 0
          %1961 = vmatprep.subr.bf16.mxu0 0
          %1962 = vmatpush1.bf16.msra.mxu0 0
          %1963 = vmatprep.subr.bf16.mxu0 0
          %1964 = vmatpush1.bf16.msra.mxu0 0
          %1965 = vmatprep.subr.bf16.mxu0 0
          %1966 = vmatpush1.bf16.msra.mxu0 0
          %1967 = vmatprep.subr.bf16.mxu0 0
          %1968 = vmatpush1.bf16.msra.mxu0 0
          %1969 = vmatprep.subr.bf16.mxu0 0
          %1970 = vmatpush1.bf16.msra.mxu0 0
          %1971 = vmatprep.subr.bf16.mxu0 0
          %1972 = vmatpush1.bf16.msra.mxu0 0
          %1973 = vmatprep.subr.bf16.mxu0 0
          %1974 = vmatpush1.bf16.msra.mxu0 0
          %1975 = vmatprep.subr.bf16.mxu0 0
          %1976 = vmatpush1.bf16.msra.mxu0 0
          %1977 = vmatprep.subr.bf16.mxu0 0
          %1978 = vmatpush1.bf16.msra.mxu0 0
          %1979 = vmatprep.mubr.bf16.mxu0 0
          %1980 = vmatmul.mubr.bf16.gmra.mrb[0].mxu0 %v1417
          %v1981 = vpop.f32.mrb[0].mxu0
          %v1982 = vadd.f32 %v1821, %v1981
          %v1983 = vpop.f32.mrb[0].mxu0
          %v1984 = vpop.f32.mrb[0].mxu0
          %v1985 = vadd.f32 %v1824, %v1984
          %v1986 = vpop.f32.mrb[0].mxu0
          %1987 = vmatprep.mubr.bf16.mxu0 0
          %1988 = vmatmul.mubr.bf16.gmra.mrb[0].mxu0 %v1420
          %v1989 = vpop.f32.mrb[0].mxu0
          %v1990 = vadd.f32 %v1829, %v1989
          %v1991 = vpop.f32.mrb[0].mxu0
          %v1992 = vpop.f32.mrb[0].mxu0
          %v1993 = vadd.f32 %v1832, %v1992
          %v1994 = vpop.f32.mrb[0].mxu0
          %1995 = vmatprep.mubr.bf16.mxu0 0
          %1996 = vmatmul.mubr.bf16.gmra.mrb[0].mxu0 %v1423
          %v1997 = vpop.f32.mrb[0].mxu0
          %v1998 = vadd.f32 %v1837, %v1997
          %v1999 = vpop.f32.mrb[0].mxu0
          %v2000 = vpop.f32.mrb[0].mxu0
          %v2001 = vadd.f32 %v1840, %v2000
          %v2002 = vpop.f32.mrb[0].mxu0
          %2003 = vmatprep.mubr.bf16.mxu0 0
          %2004 = vmatmul.mubr.bf16.gmra.mrb[0].mxu0 %v1426
          %v2005 = vpop.f32.mrb[0].mxu0
          %v2006 = vadd.f32 %v1845, %v2005
          %v2007 = vpop.f32.mrb[0].mxu0
          %v2008 = vpop.f32.mrb[0].mxu0
          %v2009 = vadd.f32 %v1848, %v2008
          %v2010 = vpop.f32.mrb[0].mxu0
          %2011 = vmatprep.mubr.bf16.mxu0 0
          %2012 = vmatmul.mubr.bf16.gmra.mrb[0].mxu0 %v1429
          %v2013 = vpop.f32.mrb[0].mxu0
          %v2014 = vadd.f32 %v1853, %v2013
          %v2015 = vpop.f32.mrb[0].mxu0
          %v2016 = vpop.f32.mrb[0].mxu0
          %v2017 = vadd.f32 %v1856, %v2016
          %v2018 = vpop.f32.mrb[0].mxu0
          %2019 = vmatprep.mubr.bf16.mxu0 0
          %2020 = vmatmul.mubr.bf16.gmra.mrb[0].mxu0 %v1432
          %v2021 = vpop.f32.mrb[0].mxu0
          %v2022 = vadd.f32 %v1861, %v2021
          %v2023 = vpop.f32.mrb[0].mxu0
          %v2024 = vpop.f32.mrb[0].mxu0
          %v2025 = vadd.f32 %v1864, %v2024
          %v2026 = vpop.f32.mrb[0].mxu0
          %2027 = vmatprep.mubr.bf16.mxu0 0
          %2028 = vmatmul.mubr.bf16.gmra.mrb[0].mxu0 %v1435
          %v2029 = vpop.f32.mrb[0].mxu0
          %v2030 = vadd.f32 %v1869, %v2029
          %v2031 = vpop.f32.mrb[0].mxu0
          %v2032 = vpop.f32.mrb[0].mxu0
          %v2033 = vadd.f32 %v1872, %v2032
          %v2034 = vpop.f32.mrb[0].mxu0
          %2035 = vmatprep.mubr.bf16.mxu0 0
          %2036 = vmatmul.mubr.bf16.gmra.mrb[0].mxu0 %v1438
          %v2037 = vpop.f32.mrb[0].mxu0
          %v2038 = vadd.f32 %v1877, %v2037
          %v2039 = vpop.f32.mrb[0].mxu0
          %v2040 = vpop.f32.mrb[0].mxu0
          %v2041 = vadd.f32 %v1880, %v2040
          %v2042 = vpop.f32.mrb[0].mxu0
          %2043 = vmatprep.mubr.bf16.mxu0 0
          %2044 = vmatmul.mubr.bf16.gmra.mrb[0].mxu0 %v1441
          %v2045 = vpop.f32.mrb[0].mxu0
          %v2046 = vadd.f32 %v1885, %v2045
          %v2047 = vpop.f32.mrb[0].mxu0
          %v2048 = vpop.f32.mrb[0].mxu0
          %v2049 = vadd.f32 %v1888, %v2048
          %v2050 = vpop.f32.mrb[0].mxu0
          %2051 = vmatprep.mubr.bf16.mxu0 0
          %2052 = vmatmul.mubr.bf16.gmra.mrb[0].mxu0 %v1444
          %v2053 = vpop.f32.mrb[0].mxu0
          %v2054 = vadd.f32 %v1893, %v2053
          %v2055 = vpop.f32.mrb[0].mxu0
          %v2056 = vpop.f32.mrb[0].mxu0
          %v2057 = vadd.f32 %v1896, %v2056
          %v2058 = vpop.f32.mrb[0].mxu0
          %2059 = vmatprep.mubr.bf16.mxu0 0
          %2060 = vmatmul.mubr.bf16.gmra.mrb[0].mxu0 %v1447
          %v2061 = vpop.f32.mrb[0].mxu0
          %v2062 = vadd.f32 %v1901, %v2061
          %v2063 = vpop.f32.mrb[0].mxu0
          %v2064 = vpop.f32.mrb[0].mxu0
          %v2065 = vadd.f32 %v1904, %v2064
          %v2066 = vpop.f32.mrb[0].mxu0
          %2067 = vmatprep.mubr.bf16.mxu0 0
          %2068 = vmatmul.mubr.bf16.gmra.mrb[0].mxu0 %v1450
          %v2069 = vpop.f32.mrb[0].mxu0
          %v2070 = vadd.f32 %v1909, %v2069
          %v2071 = vpop.f32.mrb[0].mxu0
          %v2072 = vpop.f32.mrb[0].mxu0
          %v2073 = vadd.f32 %v1912, %v2072
          %v2074 = vpop.f32.mrb[0].mxu0
          %2075 = vmatprep.mubr.bf16.mxu0 0
          %2076 = vmatmul.mubr.bf16.gmra.mrb[0].mxu0 %v1453
          %v2077 = vpop.f32.mrb[0].mxu0
          %v2078 = vadd.f32 %v1917, %v2077
          %v2079 = vpop.f32.mrb[0].mxu0
          %v2080 = vpop.f32.mrb[0].mxu0
          %v2081 = vadd.f32 %v1920, %v2080
          %v2082 = vpop.f32.mrb[0].mxu0
          %2083 = vmatprep.mubr.bf16.mxu0 0
          %2084 = vmatmul.mubr.bf16.gmra.mrb[0].mxu0 %v1456
          %v2085 = vpop.f32.mrb[0].mxu0
          %v2086 = vadd.f32 %v1925, %v2085
          %v2087 = vpop.f32.mrb[0].mxu0
          %v2088 = vpop.f32.mrb[0].mxu0
          %v2089 = vadd.f32 %v1928, %v2088
          %v2090 = vpop.f32.mrb[0].mxu0
          %2091 = vmatprep.mubr.bf16.mxu0 0
          %2092 = vmatmul.mubr.bf16.gmra.mrb[0].mxu0 %v1459
          %v2093 = vpop.f32.mrb[0].mxu0
          %v2094 = vadd.f32 %v1933, %v2093
          %v2095 = vpop.f32.mrb[0].mxu0
          %v2096 = vpop.f32.mrb[0].mxu0
          %v2097 = vadd.f32 %v1936, %v2096
          %v2098 = vpop.f32.mrb[0].mxu0
          %2099 = vmatprep.mubr.bf16.mxu0 0
          %2100 = vmatmul.mubr.bf16.gmra.mrb[0].mxu0 %v1462
          %v2101 = vpop.f32.mrb[0].mxu0
          %v2102 = vadd.f32 %v1941, %v2101
          %v2103 = vpop.f32.mrb[0].mxu0
          %v2104 = vpop.f32.mrb[0].mxu0
          %v2105 = vadd.f32 %v1944, %v2104
          %v2106 = vpop.f32.mrb[0].mxu0
          %2107 = vdwg.mxu0
          %2108 = vmatprep.subr.bf16.mxu0 0
          %2109 = vmatpush1.bf16.msra.mxu0 %v1398
          %2110 = vmatprep.subr.bf16.mxu0 0
          %2111 = vmatpush1.bf16.msra.mxu0 %v1399
          %2112 = vmatprep.subr.bf16.mxu0 0
          %2113 = vmatpush1.bf16.msra.mxu0 %v1400
          %2114 = vmatprep.subr.bf16.mxu0 0
          %2115 = vmatpush1.bf16.msra.mxu0 %v1401
          %2116 = vmatprep.subr.bf16.mxu0 0
          %2117 = vmatpush1.bf16.msra.mxu0 %v1402
          %2118 = vmatprep.subr.bf16.mxu0 0
          %2119 = vmatpush1.bf16.msra.mxu0 %v1403
          %2120 = vmatprep.subr.bf16.mxu0 0
          %2121 = vmatpush1.bf16.msra.mxu0 %v1404
          %2122 = vmatprep.subr.bf16.mxu0 0
          %2123 = vmatpush1.bf16.msra.mxu0 %v1405
          %2124 = vmatprep.subr.bf16.mxu0 0
          %2125 = vmatpush1.bf16.msra.mxu0 %v1406
          %2126 = vmatprep.subr.bf16.mxu0 0
          %2127 = vmatpush1.bf16.msra.mxu0 %v1407
          %2128 = vmatprep.subr.bf16.mxu0 0
          %2129 = vmatpush1.bf16.msra.mxu0 %v1408
          %2130 = vmatprep.subr.bf16.mxu0 0
          %2131 = vmatpush1.bf16.msra.mxu0 %v1409
          %2132 = vmatprep.subr.bf16.mxu0 0
          %2133 = vmatpush1.bf16.msra.mxu0 %v1410
          %2134 = vmatprep.subr.bf16.mxu0 0
          %2135 = vmatpush1.bf16.msra.mxu0 %v1411
          %2136 = vmatprep.subr.bf16.mxu0 0
          %2137 = vmatpush1.bf16.msra.mxu0 %v1412
          %2138 = vmatprep.subr.bf16.mxu0 0
          %2139 = vmatpush1.bf16.msra.mxu0 %v1413
          %2140 = vmatprep.mubr.bf16.mxu0 %v1045
          %2141 = vmatmul.mubr.bf16.gmra.mrb[0].mxu0 %v1044
          %v2142 = vpop.f32.mrb[0].mxu0
          %v2143 = vadd.f32 0.0, %v2142
          %v2144 = vpop.f32.mrb[0].mxu0
          %v2145 = vpop.f32.mrb[0].mxu0
          %v2146 = vadd.f32 0.0, %v2145
          %v2147 = vpop.f32.mrb[0].mxu0
          %2148 = vmatprep.mubr.bf16.mxu0 %v1048
          %2149 = vmatmul.mubr.bf16.gmra.mrb[0].mxu0 %v1047
          %v2150 = vpop.f32.mrb[0].mxu0
          %v2151 = vadd.f32 0.0, %v2150
          %v2152 = vpop.f32.mrb[0].mxu0
          %v2153 = vpop.f32.mrb[0].mxu0
          %v2154 = vadd.f32 0.0, %v2153
          %v2155 = vpop.f32.mrb[0].mxu0
          %2156 = vmatprep.mubr.bf16.mxu0 %v1051
          %2157 = vmatmul.mubr.bf16.gmra.mrb[0].mxu0 %v1050
          %v2158 = vpop.f32.mrb[0].mxu0
          %v2159 = vadd.f32 0.0, %v2158
          %v2160 = vpop.f32.mrb[0].mxu0
          %v2161 = vpop.f32.mrb[0].mxu0
          %v2162 = vadd.f32 0.0, %v2161
          %v2163 = vpop.f32.mrb[0].mxu0
          %2164 = vmatprep.mubr.bf16.mxu0 %v1054
          %2165 = vmatmul.mubr.bf16.gmra.mrb[0].mxu0 %v1053
          %v2166 = vpop.f32.mrb[0].mxu0
          %v2167 = vadd.f32 0.0, %v2166
          %v2168 = vpop.f32.mrb[0].mxu0
          %v2169 = vpop.f32.mrb[0].mxu0
          %v2170 = vadd.f32 0.0, %v2169
          %v2171 = vpop.f32.mrb[0].mxu0
          %2172 = vmatprep.mubr.bf16.mxu0 %v1057
          %2173 = vmatmul.mubr.bf16.gmra.mrb[0].mxu0 %v1056
          %v2174 = vpop.f32.mrb[0].mxu0
          %v2175 = vadd.f32 0.0, %v2174
          %v2176 = vpop.f32.mrb[0].mxu0
          %v2177 = vpop.f32.mrb[0].mxu0
          %v2178 = vadd.f32 0.0, %v2177
          %v2179 = vpop.f32.mrb[0].mxu0
          %2180 = vmatprep.mubr.bf16.mxu0 %v1060
          %2181 = vmatmul.mubr.bf16.gmra.mrb[0].mxu0 %v1059
          %v2182 = vpop.f32.mrb[0].mxu0
          %v2183 = vadd.f32 0.0, %v2182
          %v2184 = vpop.f32.mrb[0].mxu0
          %v2185 = vpop.f32.mrb[0].mxu0
          %v2186 = vadd.f32 0.0, %v2185
          %v2187 = vpop.f32.mrb[0].mxu0
          %2188 = vmatprep.mubr.bf16.mxu0 %v1063
          %2189 = vmatmul.mubr.bf16.gmra.mrb[0].mxu0 %v1062
          %v2190 = vpop.f32.mrb[0].mxu0
          %v2191 = vadd.f32 0.0, %v2190
          %v2192 = vpop.f32.mrb[0].mxu0
          %v2193 = vpop.f32.mrb[0].mxu0
          %v2194 = vadd.f32 0.0, %v2193
          %v2195 = vpop.f32.mrb[0].mxu0
          %2196 = vmatprep.mubr.bf16.mxu0 %v1066
          %2197 = vmatmul.mubr.bf16.gmra.mrb[0].mxu0 %v1065
          %v2198 = vpop.f32.mrb[0].mxu0
          %v2199 = vadd.f32 0.0, %v2198
          %v2200 = vpop.f32.mrb[0].mxu0
          %v2201 = vpop.f32.mrb[0].mxu0
          %v2202 = vadd.f32 0.0, %v2201
          %v2203 = vpop.f32.mrb[0].mxu0
          %2204 = vmatprep.mubr.bf16.mxu0 %v1069
          %2205 = vmatmul.mubr.bf16.gmra.mrb[0].mxu0 %v1068
          %v2206 = vpop.f32.mrb[0].mxu0
          %v2207 = vadd.f32 0.0, %v2206
          %v2208 = vpop.f32.mrb[0].mxu0
          %v2209 = vpop.f32.mrb[0].mxu0
          %v2210 = vadd.f32 0.0, %v2209
          %v2211 = vpop.f32.mrb[0].mxu0
          %2212 = vmatprep.mubr.bf16.mxu0 %v1072
          %2213 = vmatmul.mubr.bf16.gmra.mrb[0].mxu0 %v1071
          %v2214 = vpop.f32.mrb[0].mxu0
          %v2215 = vadd.f32 0.0, %v2214
          %v2216 = vpop.f32.mrb[0].mxu0
          %v2217 = vpop.f32.mrb[0].mxu0
          %v2218 = vadd.f32 0.0, %v2217
          %v2219 = vpop.f32.mrb[0].mxu0
          %2220 = vmatprep.mubr.bf16.mxu0 %v1075
          %2221 = vmatmul.mubr.bf16.gmra.mrb[0].mxu0 %v1074
          %v2222 = vpop.f32.mrb[0].mxu0
          %v2223 = vadd.f32 0.0, %v2222
          %v2224 = vpop.f32.mrb[0].mxu0
          %v2225 = vpop.f32.mrb[0].mxu0
          %v2226 = vadd.f32 0.0, %v2225
          %v2227 = vpop.f32.mrb[0].mxu0
          %2228 = vmatprep.mubr.bf16.mxu0 %v1078
          %2229 = vmatmul.mubr.bf16.gmra.mrb[0].mxu0 %v1077
          %v2230 = vpop.f32.mrb[0].mxu0
          %v2231 = vadd.f32 0.0, %v2230
          %v2232 = vpop.f32.mrb[0].mxu0
          %v2233 = vpop.f32.mrb[0].mxu0
          %v2234 = vadd.f32 0.0, %v2233
          %v2235 = vpop.f32.mrb[0].mxu0
          %2236 = vmatprep.mubr.bf16.mxu0 %v1081
          %2237 = vmatmul.mubr.bf16.gmra.mrb[0].mxu0 %v1080
          %v2238 = vpop.f32.mrb[0].mxu0
          %v2239 = vadd.f32 0.0, %v2238
          %v2240 = vpop.f32.mrb[0].mxu0
          %v2241 = vpop.f32.mrb[0].mxu0
          %v2242 = vadd.f32 0.0, %v2241
          %v2243 = vpop.f32.mrb[0].mxu0
          %2244 = vmatprep.mubr.bf16.mxu0 %v1084
          %2245 = vmatmul.mubr.bf16.gmra.mrb[0].mxu0 %v1083
          %v2246 = vpop.f32.mrb[0].mxu0
          %v2247 = vadd.f32 0.0, %v2246
          %v2248 = vpop.f32.mrb[0].mxu0
          %v2249 = vpop.f32.mrb[0].mxu0
          %v2250 = vadd.f32 0.0, %v2249
          %v2251 = vpop.f32.mrb[0].mxu0
          %2252 = vmatprep.mubr.bf16.mxu0 %v1087
          %2253 = vmatmul.mubr.bf16.gmra.mrb[0].mxu0 %v1086
          %v2254 = vpop.f32.mrb[0].mxu0
          %v2255 = vadd.f32 0.0, %v2254
          %v2256 = vpop.f32.mrb[0].mxu0
          %v2257 = vpop.f32.mrb[0].mxu0
          %v2258 = vadd.f32 0.0, %v2257
          %v2259 = vpop.f32.mrb[0].mxu0
          %2260 = vmatprep.mubr.bf16.mxu0 %v1090
          %2261 = vmatmul.mubr.bf16.gmra.mrb[0].mxu0 %v1089
          %v2262 = vpop.f32.mrb[0].mxu0
          %v2263 = vadd.f32 0.0, %v2262
          %v2264 = vpop.f32.mrb[0].mxu0
          %v2265 = vpop.f32.mrb[0].mxu0
          %v2266 = vadd.f32 0.0, %v2265
          %v2267 = vpop.f32.mrb[0].mxu0
          %2268 = vdwg.mxu0
          %2269 = vmatprep.subr.bf16.mxu0 0
          %2270 = vmatpush1.bf16.msra.mxu0 %v1414
          %2271 = vmatprep.subr.bf16.mxu0 0
          %2272 = vmatpush1.bf16.msra.mxu0 0
          %2273 = vmatprep.subr.bf16.mxu0 0
          %2274 = vmatpush1.bf16.msra.mxu0 0
          %2275 = vmatprep.subr.bf16.mxu0 0
          %2276 = vmatpush1.bf16.msra.mxu0 0
          %2277 = vmatprep.subr.bf16.mxu0 0
          %2278 = vmatpush1.bf16.msra.mxu0 0
          %2279 = vmatprep.subr.bf16.mxu0 0
          %2280 = vmatpush1.bf16.msra.mxu0 0
          %2281 = vmatprep.subr.bf16.mxu0 0
          %2282 = vmatpush1.bf16.msra.mxu0 0
          %2283 = vmatprep.subr.bf16.mxu0 0
          %2284 = vmatpush1.bf16.msra.mxu0 0
          %2285 = vmatprep.subr.bf16.mxu0 0
          %2286 = vmatpush1.bf16.msra.mxu0 0
          %2287 = vmatprep.subr.bf16.mxu0 0
          %2288 = vmatpush1.bf16.msra.mxu0 0
          %2289 = vmatprep.subr.bf16.mxu0 0
          %2290 = vmatpush1.bf16.msra.mxu0 0
          %2291 = vmatprep.subr.bf16.mxu0 0
          %2292 = vmatpush1.bf16.msra.mxu0 0
          %2293 = vmatprep.subr.bf16.mxu0 0
          %2294 = vmatpush1.bf16.msra.mxu0 0
          %2295 = vmatprep.subr.bf16.mxu0 0
          %2296 = vmatpush1.bf16.msra.mxu0 0
          %2297 = vmatprep.subr.bf16.mxu0 0
          %2298 = vmatpush1.bf16.msra.mxu0 0
          %2299 = vmatprep.subr.bf16.mxu0 0
          %2300 = vmatpush1.bf16.msra.mxu0 0
          %2301 = vmatprep.mubr.bf16.mxu0 0
          %2302 = vmatmul.mubr.bf16.gmra.mrb[0].mxu0 %v1417
          %v2303 = vpop.f32.mrb[0].mxu0
          %v2304 = vadd.f32 %v2143, %v2303
          %v2305 = vpop.f32.mrb[0].mxu0
          %v2306 = vpop.f32.mrb[0].mxu0
          %v2307 = vadd.f32 %v2146, %v2306
          %v2308 = vpop.f32.mrb[0].mxu0
          %2309 = vmatprep.mubr.bf16.mxu0 0
          %2310 = vmatmul.mubr.bf16.gmra.mrb[0].mxu0 %v1420
          %v2311 = vpop.f32.mrb[0].mxu0
          %v2312 = vadd.f32 %v2151, %v2311
          %v2313 = vpop.f32.mrb[0].mxu0
          %v2314 = vpop.f32.mrb[0].mxu0
          %v2315 = vadd.f32 %v2154, %v2314
          %v2316 = vpop.f32.mrb[0].mxu0
          %2317 = vmatprep.mubr.bf16.mxu0 0
          %2318 = vmatmul.mubr.bf16.gmra.mrb[0].mxu0 %v1423
          %v2319 = vpop.f32.mrb[0].mxu0
          %v2320 = vadd.f32 %v2159, %v2319
          %v2321 = vpop.f32.mrb[0].mxu0
          %v2322 = vpop.f32.mrb[0].mxu0
          %v2323 = vadd.f32 %v2162, %v2322
          %v2324 = vpop.f32.mrb[0].mxu0
          %2325 = vmatprep.mubr.bf16.mxu0 0
          %2326 = vmatmul.mubr.bf16.gmra.mrb[0].mxu0 %v1426
          %v2327 = vpop.f32.mrb[0].mxu0
          %v2328 = vadd.f32 %v2167, %v2327
          %v2329 = vpop.f32.mrb[0].mxu0
          %v2330 = vpop.f32.mrb[0].mxu0
          %v2331 = vadd.f32 %v2170, %v2330
          %v2332 = vpop.f32.mrb[0].mxu0
          %2333 = vmatprep.mubr.bf16.mxu0 0
          %2334 = vmatmul.mubr.bf16.gmra.mrb[0].mxu0 %v1429
          %v2335 = vpop.f32.mrb[0].mxu0
          %v2336 = vadd.f32 %v2175, %v2335
          %v2337 = vpop.f32.mrb[0].mxu0
          %v2338 = vpop.f32.mrb[0].mxu0
          %v2339 = vadd.f32 %v2178, %v2338
          %v2340 = vpop.f32.mrb[0].mxu0
          %2341 = vmatprep.mubr.bf16.mxu0 0
          %2342 = vmatmul.mubr.bf16.gmra.mrb[0].mxu0 %v1432
          %v2343 = vpop.f32.mrb[0].mxu0
          %v2344 = vadd.f32 %v2183, %v2343
          %v2345 = vpop.f32.mrb[0].mxu0
          %v2346 = vpop.f32.mrb[0].mxu0
          %v2347 = vadd.f32 %v2186, %v2346
          %v2348 = vpop.f32.mrb[0].mxu0
          %2349 = vmatprep.mubr.bf16.mxu0 0
          %2350 = vmatmul.mubr.bf16.gmra.mrb[0].mxu0 %v1435
          %v2351 = vpop.f32.mrb[0].mxu0
          %v2352 = vadd.f32 %v2191, %v2351
          %v2353 = vpop.f32.mrb[0].mxu0
          %v2354 = vpop.f32.mrb[0].mxu0
          %v2355 = vadd.f32 %v2194, %v2354
          %v2356 = vpop.f32.mrb[0].mxu0
          %2357 = vmatprep.mubr.bf16.mxu0 0
          %2358 = vmatmul.mubr.bf16.gmra.mrb[0].mxu0 %v1438
          %v2359 = vpop.f32.mrb[0].mxu0
          %v2360 = vadd.f32 %v2199, %v2359
          %v2361 = vpop.f32.mrb[0].mxu0
          %v2362 = vpop.f32.mrb[0].mxu0
          %v2363 = vadd.f32 %v2202, %v2362
          %v2364 = vpop.f32.mrb[0].mxu0
          %2365 = vmatprep.mubr.bf16.mxu0 0
          %2366 = vmatmul.mubr.bf16.gmra.mrb[0].mxu0 %v1441
          %v2367 = vpop.f32.mrb[0].mxu0
          %v2368 = vadd.f32 %v2207, %v2367
          %v2369 = vpop.f32.mrb[0].mxu0
          %v2370 = vpop.f32.mrb[0].mxu0
          %v2371 = vadd.f32 %v2210, %v2370
          %v2372 = vpop.f32.mrb[0].mxu0
          %2373 = vmatprep.mubr.bf16.mxu0 0
          %2374 = vmatmul.mubr.bf16.gmra.mrb[0].mxu0 %v1444
          %v2375 = vpop.f32.mrb[0].mxu0
          %v2376 = vadd.f32 %v2215, %v2375
          %v2377 = vpop.f32.mrb[0].mxu0
          %v2378 = vpop.f32.mrb[0].mxu0
          %v2379 = vadd.f32 %v2218, %v2378
          %v2380 = vpop.f32.mrb[0].mxu0
          %2381 = vmatprep.mubr.bf16.mxu0 0
          %2382 = vmatmul.mubr.bf16.gmra.mrb[0].mxu0 %v1447
          %v2383 = vpop.f32.mrb[0].mxu0
          %v2384 = vadd.f32 %v2223, %v2383
          %v2385 = vpop.f32.mrb[0].mxu0
          %v2386 = vpop.f32.mrb[0].mxu0
          %v2387 = vadd.f32 %v2226, %v2386
          %v2388 = vpop.f32.mrb[0].mxu0
          %2389 = vmatprep.mubr.bf16.mxu0 0
          %2390 = vmatmul.mubr.bf16.gmra.mrb[0].mxu0 %v1450
          %v2391 = vpop.f32.mrb[0].mxu0
          %v2392 = vadd.f32 %v2231, %v2391
          %v2393 = vpop.f32.mrb[0].mxu0
          %v2394 = vpop.f32.mrb[0].mxu0
          %v2395 = vadd.f32 %v2234, %v2394
          %v2396 = vpop.f32.mrb[0].mxu0
          %2397 = vmatprep.mubr.bf16.mxu0 0
          %2398 = vmatmul.mubr.bf16.gmra.mrb[0].mxu0 %v1453
          %v2399 = vpop.f32.mrb[0].mxu0
          %v2400 = vadd.f32 %v2239, %v2399
          %v2401 = vpop.f32.mrb[0].mxu0
          %v2402 = vpop.f32.mrb[0].mxu0
          %v2403 = vadd.f32 %v2242, %v2402
          %v2404 = vpop.f32.mrb[0].mxu0
          %2405 = vmatprep.mubr.bf16.mxu0 0
          %2406 = vmatmul.mubr.bf16.gmra.mrb[0].mxu0 %v1456
          %v2407 = vpop.f32.mrb[0].mxu0
          %v2408 = vadd.f32 %v2247, %v2407
          %v2409 = vpop.f32.mrb[0].mxu0
          %v2410 = vpop.f32.mrb[0].mxu0
          %v2411 = vadd.f32 %v2250, %v2410
          %v2412 = vpop.f32.mrb[0].mxu0
          %2413 = vmatprep.mubr.bf16.mxu0 0
          %2414 = vmatmul.mubr.bf16.gmra.mrb[0].mxu0 %v1459
          %v2415 = vpop.f32.mrb[0].mxu0
          %v2416 = vadd.f32 %v2255, %v2415
          %v2417 = vpop.f32.mrb[0].mxu0
          %v2418 = vpop.f32.mrb[0].mxu0
          %v2419 = vadd.f32 %v2258, %v2418
          %v2420 = vpop.f32.mrb[0].mxu0
          %2421 = vmatprep.mubr.bf16.mxu0 0
          %2422 = vmatmul.mubr.bf16.gmra.mrb[0].mxu0 %v1462
          %v2423 = vpop.f32.mrb[0].mxu0
          %v2424 = vadd.f32 %v2263, %v2423
          %v2425 = vpop.f32.mrb[0].mxu0
          %v2426 = vpop.f32.mrb[0].mxu0
          %v2427 = vadd.f32 %v2266, %v2426
          %v2428 = vpop.f32.mrb[0].mxu0
          %2429 = vdwg.mxu0
          %v2430 = vadd.f32 %v1982, %v2304
          %v2431 = vadd.f32 %v1985, %v2307
          %v2432 = vadd.f32 %v1990, %v2312
          %v2433 = vadd.f32 %v1993, %v2315
          %v2434 = vadd.f32 %v1998, %v2320
          %v2435 = vadd.f32 %v2001, %v2323
          %v2436 = vadd.f32 %v2006, %v2328
          %v2437 = vadd.f32 %v2009, %v2331
          %v2438 = vadd.f32 %v2014, %v2336
          %v2439 = vadd.f32 %v2017, %v2339
          %v2440 = vadd.f32 %v2022, %v2344
          %v2441 = vadd.f32 %v2025, %v2347
          %v2442 = vadd.f32 %v2030, %v2352
          %v2443 = vadd.f32 %v2033, %v2355
          %v2444 = vadd.f32 %v2038, %v2360
          %v2445 = vadd.f32 %v2041, %v2363
          %v2446 = vadd.f32 %v2046, %v2368
          %v2447 = vadd.f32 %v2049, %v2371
          %v2448 = vadd.f32 %v2054, %v2376
          %v2449 = vadd.f32 %v2057, %v2379
          %v2450 = vadd.f32 %v2062, %v2384
          %v2451 = vadd.f32 %v2065, %v2387
          %v2452 = vadd.f32 %v2070, %v2392
          %v2453 = vadd.f32 %v2073, %v2395
          %v2454 = vadd.f32 %v2078, %v2400
          %v2455 = vadd.f32 %v2081, %v2403
          %v2456 = vadd.f32 %v2086, %v2408
          %v2457 = vadd.f32 %v2089, %v2411
          %v2458 = vadd.f32 %v2094, %v2416
          %v2459 = vadd.f32 %v2097, %v2419
          %v2460 = vadd.f32 %v2102, %v2424
          %v2461 = vadd.f32 %v2105, %v2427
          %v2462 = vld [vmem:[%s372] sm:$0xff]
          %v2463 = vld [vmem:[%s372 + $0x8] sm:$0xff]
          %v2464 = vld [vmem:[%s372 + $0x10] sm:$0xff]
          %v2465 = vld [vmem:[%s372 + $0x18] sm:$0xff]
          %v2466 = vld [vmem:[%s372 + $0x20] sm:$0xff]
          %v2467 = vld [vmem:[%s372 + $0x28] sm:$0xff]
          %v2468 = vld [vmem:[%s372 + $0x30] sm:$0xff]
          %v2469 = vld [vmem:[%s372 + $0x38] sm:$0xff]
          %v2470 = vld [vmem:[%s372 + $0x40] sm:$0xff]
          %v2471 = vld [vmem:[%s372 + $0x48] sm:$0xff]
          %v2472 = vld [vmem:[%s372 + $0x50] sm:$0xff]
          %v2473 = vld [vmem:[%s372 + $0x58] sm:$0xff]
          %v2474 = vld [vmem:[%s372 + $0x60] sm:$0xff]
          %v2475 = vld [vmem:[%s372 + $0x68] sm:$0xff]
          %v2476 = vld [vmem:[%s372 + $0x70] sm:$0xff]
          %v2477 = vld [vmem:[%s372 + $0x78] sm:$0xff]
          %v2478 = vld [vmem:[%s372 + $0x80] sm:$0xff]
          %v2479 = vld [vmem:[%s372 + $0x88] sm:$0xff]
          %v2480 = vld [vmem:[%s372 + $0x90] sm:$0xff]
          %v2481 = vld [vmem:[%s372 + $0x98] sm:$0xff]
          %v2482 = vld [vmem:[%s372 + $0xa0] sm:$0xff]
          %v2483 = vld [vmem:[%s372 + $0xa8] sm:$0xff]
          %v2484 = vld [vmem:[%s372 + $0xb0] sm:$0xff]
          %v2485 = vld [vmem:[%s372 + $0xb8] sm:$0xff]
          %v2486 = vld [vmem:[%s372 + $0xc0] sm:$0xff]
          %v2487 = vld [vmem:[%s372 + $0xc8] sm:$0xff]
          %v2488 = vld [vmem:[%s372 + $0xd0] sm:$0xff]
          %v2489 = vld [vmem:[%s372 + $0xd8] sm:$0xff]
          %v2490 = vld [vmem:[%s372 + $0xe0] sm:$0xff]
          %v2491 = vld [vmem:[%s372 + $0xe8] sm:$0xff]
          %v2492 = vld [vmem:[%s372 + $0xf0] sm:$0xff]
          %v2493 = vld [vmem:[%s372 + $0xf8] sm:$0xff]
          %vm2494 = vcmp.ne.s32.totalorder %v2462, 0
          %vm2495 = vcmp.ne.s32.totalorder %v2463, 0
          %vm2496 = vcmp.ne.s32.totalorder %v2464, 0
          %vm2497 = vcmp.ne.s32.totalorder %v2465, 0
          %vm2498 = vcmp.ne.s32.totalorder %v2466, 0
          %vm2499 = vcmp.ne.s32.totalorder %v2467, 0
          %vm2500 = vcmp.ne.s32.totalorder %v2468, 0
          %vm2501 = vcmp.ne.s32.totalorder %v2469, 0
          %vm2502 = vcmp.ne.s32.totalorder %v2470, 0
          %vm2503 = vcmp.ne.s32.totalorder %v2471, 0
          %vm2504 = vcmp.ne.s32.totalorder %v2472, 0
          %vm2505 = vcmp.ne.s32.totalorder %v2473, 0
          %vm2506 = vcmp.ne.s32.totalorder %v2474, 0
          %vm2507 = vcmp.ne.s32.totalorder %v2475, 0
          %vm2508 = vcmp.ne.s32.totalorder %v2476, 0
          %vm2509 = vcmp.ne.s32.totalorder %v2477, 0
          %vm2510 = vcmp.ne.s32.totalorder %v2478, 0
          %vm2511 = vcmp.ne.s32.totalorder %v2479, 0
          %vm2512 = vcmp.ne.s32.totalorder %v2480, 0
          %vm2513 = vcmp.ne.s32.totalorder %v2481, 0
          %vm2514 = vcmp.ne.s32.totalorder %v2482, 0
          %vm2515 = vcmp.ne.s32.totalorder %v2483, 0
          %vm2516 = vcmp.ne.s32.totalorder %v2484, 0
          %vm2517 = vcmp.ne.s32.totalorder %v2485, 0
          %vm2518 = vcmp.ne.s32.totalorder %v2486, 0
          %vm2519 = vcmp.ne.s32.totalorder %v2487, 0
          %vm2520 = vcmp.ne.s32.totalorder %v2488, 0
          %vm2521 = vcmp.ne.s32.totalorder %v2489, 0
          %vm2522 = vcmp.ne.s32.totalorder %v2490, 0
          %vm2523 = vcmp.ne.s32.totalorder %v2491, 0
          %vm2524 = vcmp.ne.s32.totalorder %v2492, 0
          %vm2525 = vcmp.ne.s32.totalorder %v2493, 0
          %v2526 = vld [vmem:[%s295] sm:$0xff]
          %v2527 = vld [vmem:[%s295 + $0x8] sm:$0xff]
          %v2528 = vld [vmem:[%s295 + $0x10] sm:$0xff]
          %v2529 = vld [vmem:[%s295 + $0x18] sm:$0xff]
          %v2530 = vld [vmem:[%s295 + $0x20] sm:$0xff]
          %v2531 = vld [vmem:[%s295 + $0x28] sm:$0xff]
          %v2532 = vld [vmem:[%s295 + $0x30] sm:$0xff]
          %v2533 = vld [vmem:[%s295 + $0x38] sm:$0xff]
          %v2534 = vld [vmem:[%s295 + $0x40] sm:$0xff]
          %v2535 = vld [vmem:[%s295 + $0x48] sm:$0xff]
          %v2536 = vld [vmem:[%s295 + $0x50] sm:$0xff]
          %v2537 = vld [vmem:[%s295 + $0x58] sm:$0xff]
          %v2538 = vld [vmem:[%s295 + $0x60] sm:$0xff]
          %v2539 = vld [vmem:[%s295 + $0x68] sm:$0xff]
          %v2540 = vld [vmem:[%s295 + $0x70] sm:$0xff]
          %v2541 = vld [vmem:[%s295 + $0x78] sm:$0xff]
          %v2542 = vld [vmem:[%s295 + $0x80] sm:$0xff]
          %v2543 = vld [vmem:[%s295 + $0x88] sm:$0xff]
          %v2544 = vld [vmem:[%s295 + $0x90] sm:$0xff]
          %v2545 = vld [vmem:[%s295 + $0x98] sm:$0xff]
          %v2546 = vld [vmem:[%s295 + $0xa0] sm:$0xff]
          %v2547 = vld [vmem:[%s295 + $0xa8] sm:$0xff]
          %v2548 = vld [vmem:[%s295 + $0xb0] sm:$0xff]
          %v2549 = vld [vmem:[%s295 + $0xb8] sm:$0xff]
          %v2550 = vld [vmem:[%s295 + $0xc0] sm:$0xff]
          %v2551 = vld [vmem:[%s295 + $0xc8] sm:$0xff]
          %v2552 = vld [vmem:[%s295 + $0xd0] sm:$0xff]
          %v2553 = vld [vmem:[%s295 + $0xd8] sm:$0xff]
          %v2554 = vld [vmem:[%s295 + $0xe0] sm:$0xff]
          %v2555 = vld [vmem:[%s295 + $0xe8] sm:$0xff]
          %v2556 = vld [vmem:[%s295 + $0xf0] sm:$0xff]
          %v2557 = vld [vmem:[%s295 + $0xf8] sm:$0xff]
          %v2558 = vsel %vm2494, 1, 0
          %v2559 = vsel %vm2495, 1, 0
          %v2560 = vsel %vm2496, 1, 0
          %v2561 = vsel %vm2497, 1, 0
          %v2562 = vsel %vm2498, 1, 0
          %v2563 = vsel %vm2499, 1, 0
          %v2564 = vsel %vm2500, 1, 0
          %v2565 = vsel %vm2501, 1, 0
          %v2566 = vsel %vm2502, 1, 0
          %v2567 = vsel %vm2503, 1, 0
          %v2568 = vsel %vm2504, 1, 0
          %v2569 = vsel %vm2505, 1, 0
          %v2570 = vsel %vm2506, 1, 0
          %v2571 = vsel %vm2507, 1, 0
          %v2572 = vsel %vm2508, 1, 0
          %v2573 = vsel %vm2509, 1, 0
          %v2574 = vsel %vm2510, 1, 0
          %v2575 = vsel %vm2511, 1, 0
          %v2576 = vsel %vm2512, 1, 0
          %v2577 = vsel %vm2513, 1, 0
          %v2578 = vsel %vm2514, 1, 0
          %v2579 = vsel %vm2515, 1, 0
          %v2580 = vsel %vm2516, 1, 0
          %v2581 = vsel %vm2517, 1, 0
          %v2582 = vsel %vm2518, 1, 0
          %v2583 = vsel %vm2519, 1, 0
          %v2584 = vsel %vm2520, 1, 0
          %v2585 = vsel %vm2521, 1, 0
          %v2586 = vsel %vm2522, 1, 0
          %v2587 = vsel %vm2523, 1, 0
          %v2588 = vsel %vm2524, 1, 0
          %v2589 = vsel %vm2525, 1, 0
          %2590 = vset.pattern.permute.xlu0 0
          %2591 = vperm.xlu0 %2590, %v2558
          %v2592 = vpop.permute.xlu0 %2591
          %2593 = vset.pattern.permute.xlu0 0
          %2594 = vperm.xlu0 %2593, %v2559
          %v2595 = vpop.permute.xlu0 %2594
          %2596 = vset.pattern.permute.xlu0 0
          %2597 = vperm.xlu0 %2596, %v2560
          %v2598 = vpop.permute.xlu0 %2597
          %2599 = vset.pattern.permute.xlu0 0
          %2600 = vperm.xlu0 %2599, %v2561
          %v2601 = vpop.permute.xlu0 %2600
          %2602 = vset.pattern.permute.xlu0 0
          %2603 = vperm.xlu0 %2602, %v2562
          %v2604 = vpop.permute.xlu0 %2603
          %2605 = vset.pattern.permute.xlu0 0
          %2606 = vperm.xlu0 %2605, %v2563
          %v2607 = vpop.permute.xlu0 %2606
          %2608 = vset.pattern.permute.xlu0 0
          %2609 = vperm.xlu0 %2608, %v2564
          %v2610 = vpop.permute.xlu0 %2609
          %2611 = vset.pattern.permute.xlu0 0
          %2612 = vperm.xlu0 %2611, %v2565
          %v2613 = vpop.permute.xlu0 %2612
          %2614 = vset.pattern.permute.xlu0 0
          %2615 = vperm.xlu0 %2614, %v2566
          %v2616 = vpop.permute.xlu0 %2615
          %2617 = vset.pattern.permute.xlu0 0
          %2618 = vperm.xlu0 %2617, %v2567
          %v2619 = vpop.permute.xlu0 %2618
          %2620 = vset.pattern.permute.xlu0 0
          %2621 = vperm.xlu0 %2620, %v2568
          %v2622 = vpop.permute.xlu0 %2621
          %2623 = vset.pattern.permute.xlu0 0
          %2624 = vperm.xlu0 %2623, %v2569
          %v2625 = vpop.permute.xlu0 %2624
          %2626 = vset.pattern.permute.xlu0 0
          %2627 = vperm.xlu0 %2626, %v2570
          %v2628 = vpop.permute.xlu0 %2627
          %2629 = vset.pattern.permute.xlu0 0
          %2630 = vperm.xlu0 %2629, %v2571
          %v2631 = vpop.permute.xlu0 %2630
          %2632 = vset.pattern.permute.xlu0 0
          %2633 = vperm.xlu0 %2632, %v2572
          %v2634 = vpop.permute.xlu0 %2633
          %2635 = vset.pattern.permute.xlu0 0
          %2636 = vperm.xlu0 %2635, %v2573
          %v2637 = vpop.permute.xlu0 %2636
          %2638 = vset.pattern.permute.xlu0 0
          %2639 = vperm.xlu0 %2638, %v2574
          %v2640 = vpop.permute.xlu0 %2639
          %2641 = vset.pattern.permute.xlu0 0
          %2642 = vperm.xlu0 %2641, %v2575
          %v2643 = vpop.permute.xlu0 %2642
          %2644 = vset.pattern.permute.xlu0 0
          %2645 = vperm.xlu0 %2644, %v2576
          %v2646 = vpop.permute.xlu0 %2645
          %2647 = vset.pattern.permute.xlu0 0
          %2648 = vperm.xlu0 %2647, %v2577
          %v2649 = vpop.permute.xlu0 %2648
          %2650 = vset.pattern.permute.xlu0 0
          %2651 = vperm.xlu0 %2650, %v2578
          %v2652 = vpop.permute.xlu0 %2651
          %2653 = vset.pattern.permute.xlu0 0
          %2654 = vperm.xlu0 %2653, %v2579
          %v2655 = vpop.permute.xlu0 %2654
          %2656 = vset.pattern.permute.xlu0 0
          %2657 = vperm.xlu0 %2656, %v2580
          %v2658 = vpop.permute.xlu0 %2657
          %2659 = vset.pattern.permute.xlu0 0
          %2660 = vperm.xlu0 %2659, %v2581
          %v2661 = vpop.permute.xlu0 %2660
          %2662 = vset.pattern.permute.xlu0 0
          %2663 = vperm.xlu0 %2662, %v2582
          %v2664 = vpop.permute.xlu0 %2663
          %2665 = vset.pattern.permute.xlu0 0
          %2666 = vperm.xlu0 %2665, %v2583
          %v2667 = vpop.permute.xlu0 %2666
          %2668 = vset.pattern.permute.xlu0 0
          %2669 = vperm.xlu0 %2668, %v2584
          %v2670 = vpop.permute.xlu0 %2669
          %2671 = vset.pattern.permute.xlu0 0
          %2672 = vperm.xlu0 %2671, %v2585
          %v2673 = vpop.permute.xlu0 %2672
          %2674 = vset.pattern.permute.xlu0 0
          %2675 = vperm.xlu0 %2674, %v2586
          %v2676 = vpop.permute.xlu0 %2675
          %2677 = vset.pattern.permute.xlu0 0
          %2678 = vperm.xlu0 %2677, %v2587
          %v2679 = vpop.permute.xlu0 %2678
          %2680 = vset.pattern.permute.xlu0 0
          %2681 = vperm.xlu0 %2680, %v2588
          %v2682 = vpop.permute.xlu0 %2681
          %2683 = vset.pattern.permute.xlu0 0
          %2684 = vperm.xlu0 %2683, %v2589
          %v2685 = vpop.permute.xlu0 %2684
          %vm2686 = vcmp.eq.s32.totalorder %v2592, 1
          %vm2687 = vcmp.eq.s32.totalorder %v2595, 1
          %vm2688 = vcmp.eq.s32.totalorder %v2598, 1
          %vm2689 = vcmp.eq.s32.totalorder %v2601, 1
          %vm2690 = vcmp.eq.s32.totalorder %v2604, 1
          %vm2691 = vcmp.eq.s32.totalorder %v2607, 1
          %vm2692 = vcmp.eq.s32.totalorder %v2610, 1
          %vm2693 = vcmp.eq.s32.totalorder %v2613, 1
          %vm2694 = vcmp.eq.s32.totalorder %v2616, 1
          %vm2695 = vcmp.eq.s32.totalorder %v2619, 1
          %vm2696 = vcmp.eq.s32.totalorder %v2622, 1
          %vm2697 = vcmp.eq.s32.totalorder %v2625, 1
          %vm2698 = vcmp.eq.s32.totalorder %v2628, 1
          %vm2699 = vcmp.eq.s32.totalorder %v2631, 1
          %vm2700 = vcmp.eq.s32.totalorder %v2634, 1
          %vm2701 = vcmp.eq.s32.totalorder %v2637, 1
          %vm2702 = vcmp.eq.s32.totalorder %v2640, 1
          %vm2703 = vcmp.eq.s32.totalorder %v2643, 1
          %vm2704 = vcmp.eq.s32.totalorder %v2646, 1
          %vm2705 = vcmp.eq.s32.totalorder %v2649, 1
          %vm2706 = vcmp.eq.s32.totalorder %v2652, 1
          %vm2707 = vcmp.eq.s32.totalorder %v2655, 1
          %vm2708 = vcmp.eq.s32.totalorder %v2658, 1
          %vm2709 = vcmp.eq.s32.totalorder %v2661, 1
          %vm2710 = vcmp.eq.s32.totalorder %v2664, 1
          %vm2711 = vcmp.eq.s32.totalorder %v2667, 1
          %vm2712 = vcmp.eq.s32.totalorder %v2670, 1
          %vm2713 = vcmp.eq.s32.totalorder %v2673, 1
          %vm2714 = vcmp.eq.s32.totalorder %v2676, 1
          %vm2715 = vcmp.eq.s32.totalorder %v2679, 1
          %vm2716 = vcmp.eq.s32.totalorder %v2682, 1
          %vm2717 = vcmp.eq.s32.totalorder %v2685, 1
          %v2718 = vsel %vm2686, %v2430, %v2526
          %v2719 = vsel %vm2687, %v2431, %v2527
          %v2720 = vsel %vm2688, %v2432, %v2528
          %v2721 = vsel %vm2689, %v2433, %v2529
          %v2722 = vsel %vm2690, %v2434, %v2530
          %v2723 = vsel %vm2691, %v2435, %v2531
          %v2724 = vsel %vm2692, %v2436, %v2532
          %v2725 = vsel %vm2693, %v2437, %v2533
          %v2726 = vsel %vm2694, %v2438, %v2534
          %v2727 = vsel %vm2695, %v2439, %v2535
          %v2728 = vsel %vm2696, %v2440, %v2536
          %v2729 = vsel %vm2697, %v2441, %v2537
          %v2730 = vsel %vm2698, %v2442, %v2538
          %v2731 = vsel %vm2699, %v2443, %v2539
          %v2732 = vsel %vm2700, %v2444, %v2540
          %v2733 = vsel %vm2701, %v2445, %v2541
          %v2734 = vsel %vm2702, %v2446, %v2542
          %v2735 = vsel %vm2703, %v2447, %v2543
          %v2736 = vsel %vm2704, %v2448, %v2544
          %v2737 = vsel %vm2705, %v2449, %v2545
          %v2738 = vsel %vm2706, %v2450, %v2546
          %v2739 = vsel %vm2707, %v2451, %v2547
          %v2740 = vsel %vm2708, %v2452, %v2548
          %v2741 = vsel %vm2709, %v2453, %v2549
          %v2742 = vsel %vm2710, %v2454, %v2550
          %v2743 = vsel %vm2711, %v2455, %v2551
          %v2744 = vsel %vm2712, %v2456, %v2552
          %v2745 = vsel %vm2713, %v2457, %v2553
          %v2746 = vsel %vm2714, %v2458, %v2554
          %v2747 = vsel %vm2715, %v2459, %v2555
          %v2748 = vsel %vm2716, %v2460, %v2556
          %v2749 = vsel %vm2717, %v2461, %v2557
          %2750 = vst [vmem:[%s344] sm:$0xff] %v2718
          %2751 = vst [vmem:[%s344 + $0x8] sm:$0xff] %v2719
          %2752 = vst [vmem:[%s344 + $0x10] sm:$0xff] %v2720
          %2753 = vst [vmem:[%s344 + $0x18] sm:$0xff] %v2721
          %2754 = vst [vmem:[%s344 + $0x20] sm:$0xff] %v2722
          %2755 = vst [vmem:[%s344 + $0x28] sm:$0xff] %v2723
          %2756 = vst [vmem:[%s344 + $0x30] sm:$0xff] %v2724
          %2757 = vst [vmem:[%s344 + $0x38] sm:$0xff] %v2725
          %2758 = vst [vmem:[%s344 + $0x40] sm:$0xff] %v2726
          %2759 = vst [vmem:[%s344 + $0x48] sm:$0xff] %v2727
          %2760 = vst [vmem:[%s344 + $0x50] sm:$0xff] %v2728
          %2761 = vst [vmem:[%s344 + $0x58] sm:$0xff] %v2729
          %2762 = vst [vmem:[%s344 + $0x60] sm:$0xff] %v2730
          %2763 = vst [vmem:[%s344 + $0x68] sm:$0xff] %v2731
          %2764 = vst [vmem:[%s344 + $0x70] sm:$0xff] %v2732
          %2765 = vst [vmem:[%s344 + $0x78] sm:$0xff] %v2733
          %2766 = vst [vmem:[%s344 + $0x80] sm:$0xff] %v2734
          %2767 = vst [vmem:[%s344 + $0x88] sm:$0xff] %v2735
          %2768 = vst [vmem:[%s344 + $0x90] sm:$0xff] %v2736
          %2769 = vst [vmem:[%s344 + $0x98] sm:$0xff] %v2737
          %2770 = vst [vmem:[%s344 + $0xa0] sm:$0xff] %v2738
          %2771 = vst [vmem:[%s344 + $0xa8] sm:$0xff] %v2739
          %2772 = vst [vmem:[%s344 + $0xb0] sm:$0xff] %v2740
          %2773 = vst [vmem:[%s344 + $0xb8] sm:$0xff] %v2741
          %2774 = vst [vmem:[%s344 + $0xc0] sm:$0xff] %v2742
          %2775 = vst [vmem:[%s344 + $0xc8] sm:$0xff] %v2743
          %2776 = vst [vmem:[%s344 + $0xd0] sm:$0xff] %v2744
          %2777 = vst [vmem:[%s344 + $0xd8] sm:$0xff] %v2745
          %2778 = vst [vmem:[%s344 + $0xe0] sm:$0xff] %v2746
          %2779 = vst [vmem:[%s344 + $0xe8] sm:$0xff] %v2747
          %2780 = vst [vmem:[%s344 + $0xf0] sm:$0xff] %v2748
          %2781 = vst [vmem:[%s344 + $0xf8] sm:$0xff] %v2749
        $region52: #{tpu_custom_call.1} parent=39 // pred_fallthru
          _
        %s2782 = sand.u32 %s183, 1
        %s2783 = scalar_lea.sflag [#allocation9], %s2782
        %s2784 = sand.u32 %s183, 1
        %s2785 = smul.addr %s2784, 256
        %s2786 = scalar_lea.vmem [#allocation10], %s2785
        // Predicated region
        $region53: #{tpu_custom_call.1} parent=39 // pred_check
          %p2787 = pneg %p193
        $region54: #{tpu_custom_call.1} parent=39 // pred_check_branch
          %2789 = sbr.rel (%p2787) target = $region56
        $region55: #{tpu_custom_call.1} parent=39 // pred_region
          %s2790 = smul.u32 32, %s39
          %s2791 = ssub.s32 125, %s2790
          %p2792 = scmp.lt.s32.totalorder %s2791, 32
          %s2793 = scalar_select %p2792, %s2791, 32
          %s2794 = smul.u32 128, %s2793
          %s2796 = ssub.s32 4096, %s2794
          %2797 = vsyncadd %s2783, %s2796
          %p2798 = scmp.ne.s32.totalorder 0, %s2794
          %s2799 = smul.addr %s2790, 128
          %s2800 = scalar_lea.hbm %s8, %s2799
          %s2801 = smul.u32 8, %s2793
          %s2802 = sshll.u32 %s2786, 4
          %s2803 = int_to_ptr.vmem [resolvable:$true] %s2802
          %s2804 = sshll.u32 %s2801, 4
          %2808 = dma.vmem_to_hbm [thread:$0]  (%p2798), %s2803, %s2804, %s2800, %s2783, 128, 128, 8
        $region56: #{tpu_custom_call.1} parent=39 // pred_fallthru
          _
      $region40: #{tpu_custom_call.1} parent=5 // pred_fallthru
        _
      %p2809 = scmp.le.s32.totalorder 2, %s34
      // Predicated region
      $region57: #{tpu_custom_call.1} parent=5 // pred_check
        %p2810 = pneg %p2809
      $region58: #{tpu_custom_call.1} parent=5 // pred_check_branch
        %2812 = sbr.rel (%p2810) target = $region60
      $region59: #{tpu_custom_call.1} parent=5 // pred_region
        %s2813 = ssub.s32 %s34, 2
        // Predicated region
        $region61: #{tpu_custom_call.1} parent=59 // pred_check
          %p2814 = pneg %p199
        $region62: #{tpu_custom_call.1} parent=59 // pred_check_branch
          %2816 = sbr.rel (%p2814) target = $region64
        $region63: #{tpu_custom_call.1} parent=59 // pred_region
          %s2817 = sand.u32 %s184, 1
          %s2818 = scalar_lea.sflag [#allocation9], %s2817
          %s2819 = sand.u32 %s184, 1
          %s2820 = smul.addr %s2819, 256
          %s2821 = scalar_lea.vmem [#allocation10], %s2820
          %2822 = dma.done %s2818, 4096
        $region64: #{tpu_custom_call.1} parent=59 // pred_fallthru
          _
      $region60: #{tpu_custom_call.1} parent=5 // pred_fallthru
        _
    $region6: #{tpu_custom_call.1} parent=1 // loop_footer
      %s38 = sadd.s32 1, %s34
    $region7: #{tpu_custom_call.1} parent=1 // loop_footer_branch
      %33 = sbr.rel target = $region3
    $region8: #{tpu_custom_call.1} parent=1 // loop_exit
      _
    %2823 = vsyncpa [#allocation8], 1
    %s2824 = scalar_lea.sflag [#allocation8], 1
    %2825 = vsyncpa %s2824, 1
    %2826 = vsyncpa [#allocation9], 1
    %s2827 = scalar_lea.sflag [#allocation9], 1
    %2828 = vsyncpa %s2827, 1

</llo_original>
